<compile_context>
chip_gen: v7x
topology: tpu7x:2x2x1
jax: 0.10.0
libtpu: 0.0.40
codegen_flags: <defaults>
</compile_context>

<pallas_src>
import functools

import jax
import jax.numpy as jnp
from jax import lax
from jax.experimental import pallas as pl
from jax.experimental.pallas import tpu as pltpu

EPS = 1e-5
LANE = 128
VMEM_LIMIT = 48 * 1024 * 1024          # fits v5e/v6e (128 MiB) and v7x (64 MiB)


def _round_up(x, m):
    return (x + m - 1) // m * m


# ---------------------------------------------------------------------------
# Pass 1: fused conv (shifted accumulating MXU matmuls over the tap offsets)
#         + per-batch-element partial BN statistics (sum, sum of squares).
# ---------------------------------------------------------------------------
def _conv_stats_kernel(taps, th, wo, cp, x_ref, w_ref, y_ref, sum_ref, sq_ref):
    r = pl.program_id(1)                               # row-tile index
    acc = jnp.zeros((th * wo, cp), jnp.float32)
    for t, (p, oy, ox) in enumerate(taps):             # static tap loop (unrolled)
        xs = x_ref[0, p, pl.ds(r * th + oy, th), pl.ds(ox, wo), :]
        acc += jnp.dot(xs.reshape(th * wo, xs.shape[-1]), w_ref[t],
                       preferred_element_type=jnp.float32)

    @pl.when(r == 0)                                   # per-batch accumulator init
    def _():
        sum_ref[...] = jnp.zeros_like(sum_ref)
        sq_ref[...] = jnp.zeros_like(sq_ref)

    sum_ref[...] += jnp.sum(acc, axis=0, keepdims=True)[None]
    sq_ref[...] += jnp.sum(acc * acc, axis=0, keepdims=True)[None]
    y_ref[...] = acc.reshape(1, th, wo, cp).astype(y_ref.dtype)


def conv_stats(slab, w_taps, taps, *, th, wo, ho_p, cp):
    """slab: (N, P, Hs, Ws, Cin) bf16, w_taps: (T, Cin, Cp) bf16.
    Returns y (N, ho_p, wo, cp) bf16 and per-batch partial sum/sq (N,1,cp) f32."""
    n, s2, hs, ws, cin = slab.shape
    nt = w_taps.shape[0]
    r = ho_p // th
    kernel = functools.partial(_conv_stats_kernel, tuple(taps), th, wo, cp)
    return pl.pallas_call(
        kernel,
        grid=(n, r),
        in_specs=[
            pl.BlockSpec((1, s2, hs, ws, cin), lambda i, j: (i, 0, 0, 0, 0)),
            pl.BlockSpec((nt, cin, cp), lambda i, j: (0, 0, 0)),   # weights resident
        ],
        out_specs=(
            pl.BlockSpec((1, th, wo, cp), lambda i, j: (i, j, 0, 0)),
            pl.BlockSpec((1, 1, cp), lambda i, j: (i, 0, 0)),
            pl.BlockSpec((1, 1, cp), lambda i, j: (i, 0, 0)),
        ),
        out_shape=(
            jax.ShapeDtypeStruct((n, ho_p, wo, cp), jnp.bfloat16),
            jax.ShapeDtypeStruct((n, 1, cp), jnp.float32),
            jax.ShapeDtypeStruct((n, 1, cp), jnp.float32),
        ),
        compiler_params=pltpu.CompilerParams(
            dimension_semantics=("parallel", "arbitrary"),
            vmem_limit_bytes=VMEM_LIMIT,
        ),
    )(slab, w_taps)


# ---------------------------------------------------------------------------
# Pass 2: BN apply (precomputed scale/shift) (+ residual) (+ relu)
# ---------------------------------------------------------------------------
def _bn_apply_kernel(apply_relu, has_residual, c_keep,
                     y_ref, sc_ref, sh_ref, *refs):
    if has_residual:
        res_ref, out_ref = refs
    else:
        (out_ref,) = refs
    y = y_ref[...].astype(jnp.float32)                 # (1, th, wo, cp)
    out = y * sc_ref[...] + sh_ref[...]                # broadcast (1, cp)
    out = out[..., :c_keep]
    if has_residual:
        out = out + res_ref[...].astype(jnp.float32)
    if apply_relu:
        out = jnp.maximum(out, 0.0)
    out_ref[...] = out.astype(out_ref.dtype)


def bn_apply(y, scale, shift, *, th, c_keep, apply_relu,
             residual=None, out_dtype=jnp.float32):
    n, ho_p, wo, cp = y.shape
    r = ho_p // th
    inputs = [y, scale, shift]
    in_specs = [
        pl.BlockSpec((1, th, wo, cp), lambda i, j: (i, j, 0, 0)),
        pl.BlockSpec((1, cp), lambda i, j: (0, 0)),
        pl.BlockSpec((1, cp), lambda i, j: (0, 0)),
    ]
    if residual is not None:
        cr = residual.shape[-1]
        inputs.append(residual)
        in_specs.append(pl.BlockSpec((1, th, wo, cr), lambda i, j: (i, j, 0, 0)))
    kernel = functools.partial(_bn_apply_kernel, apply_relu,
                               residual is not None, c_keep)
    return pl.pallas_call(
        kernel,
        grid=(n, r),
        in_specs=in_specs,
        out_specs=pl.BlockSpec((1, th, wo, c_keep), lambda i, j: (i, j, 0, 0)),
        out_shape=jax.ShapeDtypeStruct((n, ho_p, wo, c_keep), out_dtype),
        compiler_params=pltpu.CompilerParams(
            dimension_semantics=("parallel", "parallel"),
            vmem_limit_bytes=VMEM_LIMIT,
        ),
    )(*inputs)


# ---------------------------------------------------------------------------
# Glue: parity-slab construction, weight prep, BN scale/shift precompute
# ---------------------------------------------------------------------------
def make_slabs(x, kh, kw, stride, pad, ho_p, wo):
    """x: (N,H,W,C) NHWC.  Returns (slab, taps):
      slab: (N, P, Hs, Ws, C) bf16 stride-parity slabs of the zero-padded input
      taps: list of (parity_index, row_offset, col_offset), one per (dy, dx)."""
    s = stride
    oy_max = (kh - 1) // s
    ox_max = (kw - 1) // s
    hs = ho_p + oy_max
    ws = wo + ox_max
    xp = jnp.pad(x, ((0, 0), (pad, pad), (pad, pad), (0, 0)))

    taps_raw = [((dy % s) * s + (dx % s), dy // s, dx // s)
                for dy in range(kh) for dx in range(kw)]
    needed = sorted({p for p, _, _ in taps_raw})
    remap = {p: i for i, p in enumerate(needed)}
    taps = [(remap[p], oy, ox) for p, oy, ox in taps_raw]

    slabs = []
    for p in needed:
        py, px = p // s, p % s
        sl = xp[:, py::s, px::s, :][:, :hs, :ws, :]
        sl = jnp.pad(sl, ((0, 0), (0, hs - sl.shape[1]),
                          (0, ws - sl.shape[2]), (0, 0)))
        slabs.append(sl)
    slab = jnp.stack(slabs, axis=1).astype(jnp.bfloat16)
    return slab, taps


def prep_w(w_hwio, cp):
    kh, kw, cin, cout = w_hwio.shape
    w = w_hwio.reshape(kh * kw, cin, cout)
    return jnp.pad(w, ((0, 0), (0, 0), (0, cp - cout))).astype(jnp.bfloat16)


def bn_scale_shift(sum_p, sq_p, gamma, beta, m, cp):
    """Reduce per-batch partials -> per-channel BN scale/shift, each (1, cp)."""
    cout = gamma.shape[0]
    mean = jnp.sum(sum_p, axis=(0, 1)) / m
    var = jnp.maximum(jnp.sum(sq_p, axis=(0, 1)) / m - mean * mean, 0.0)
    g = jnp.pad(gamma, (0, cp - cout))
    b = jnp.pad(beta, (0, cp - cout))
    scale = g * lax.rsqrt(var + EPS)      # rsqrt once per channel
    shift = b - mean * scale
    return scale.reshape(1, cp), shift.reshape(1, cp)


# ---------------------------------------------------------------------------
# BasicBlock forward (input/output NCHW, like the PyTorch module)
# ---------------------------------------------------------------------------
def basic_block_forward(x_nchw, params, stride):
    n, cin, h, w = x_nchw.shape
    cout = params["w1"].shape[-1]
    ho = (h + 2 - 3) // stride + 1
    wo = (w + 2 - 3) // stride + 1
    cp = _round_up(cout, LANE)
    m = n * ho * wo

    # row tile: ~512 output pixels per grid step; output rows padded to a multiple
    th = max(1, min(ho, pl.cdiv(512, wo)))
    ho_p = _round_up(ho, th)

    x = jnp.transpose(x_nchw, (0, 2, 3, 1)).astype(jnp.bfloat16)   # NHWC bf16 once

    # ---- conv1 (3x3, stride, pad 1) + bn1 + relu --------------------------
    slab1, taps1 = make_slabs(x, 3, 3, stride, 1, ho_p, wo)
    y1, s1, q1 = conv_stats(slab1, prep_w(params["w1"], cp), taps1,
                            th=th, wo=wo, ho_p=ho_p, cp=cp)
    sc1, sh1 = bn_scale_shift(s1, q1, params["g1"], params["b1"], m, cp)
    out1 = bn_apply(y1, sc1, sh1, th=th, c_keep=cout, apply_relu=True,
                    out_dtype=jnp.bfloat16)[:, :ho]                # (N,ho,wo,cout)

    # ---- conv2 (3x3, stride 1, pad 1) -------------------------------------
    slab2, taps2 = make_slabs(out1, 3, 3, 1, 1, ho_p, wo)
    y2, s2, q2 = conv_stats(slab2, prep_w(params["w2"], cp), taps2,
                            th=th, wo=wo, ho_p=ho_p, cp=cp)
    sc2, sh2 = bn_scale_shift(s2, q2, params["g2"], params["b2"], m, cp)

    # ---- shortcut ----------------------------------------------------------
    if stride != 1 or cin != cout:
        slab_s, taps_s = make_slabs(x, 1, 1, stride, 0, ho_p, wo)
        ys, ss, qs = conv_stats(slab_s, prep_w(params["ws"], cp), taps_s,
                                th=th, wo=wo, ho_p=ho_p, cp=cp)
        scs, shs = bn_scale_shift(ss, qs, params["gs"], params["bs"], m, cp)
        short = bn_apply(ys, scs, shs, th=th, c_keep=cout, apply_relu=False,
                         out_dtype=jnp.bfloat16)                   # (N,ho_p,wo,cout)
    else:
        short = jnp.pad(x, ((0, 0), (0, ho_p - ho), (0, 0), (0, 0)))

    # ---- bn2 apply + residual + relu ---------------------------------------
    out = bn_apply(y2, sc2, sh2, th=th, c_keep=cout, apply_relu=True,
                   residual=short, out_dtype=jnp.float32)[:, :ho]
    return jnp.transpose(out, (0, 3, 1, 2))                         # back to NCHW


# ---------------------------------------------------------------------------
# Parameter init + pure-JAX reference (f32, for correctness check)
# ---------------------------------------------------------------------------
def init_params(key, cin, cout, stride):
    ks = jax.random.split(key, 9)
    p = {
        "w1": jax.random.normal(ks[0], (3, 3, cin, cout), jnp.float32) * 0.1,
        "g1": 1.0 + 0.1 * jax.random.normal(ks[1], (cout,), jnp.float32),
        "b1": 0.1 * jax.random.normal(ks[2], (cout,), jnp.float32),
        "w2": jax.random.normal(ks[3], (3, 3, cout, cout), jnp.float32) * 0.1,
        "g2": 1.0 + 0.1 * jax.random.normal(ks[4], (cout,), jnp.float32),
        "b2": 0.1 * jax.random.normal(ks[5], (cout,), jnp.float32),
    }
    if stride != 1 or cin != cout:
        p["ws"] = jax.random.normal(ks[6], (1, 1, cin, cout), jnp.float32) * 0.1
        p["gs"] = 1.0 + 0.1 * jax.random.normal(ks[7], (cout,), jnp.float32)
        p["bs"] = 0.1 * jax.random.normal(ks[8], (cout,), jnp.float32)
    return p


def _ref_bn(y, gamma, beta):
    mean = y.mean(axis=(0, 1, 2), keepdims=True)
    var = ((y - mean) ** 2).mean(axis=(0, 1, 2), keepdims=True)
    return (y - mean) * lax.rsqrt(var + EPS) * gamma.reshape(1, 1, 1, -1) \
        + beta.reshape(1, 1, 1, -1)


def reference_forward(x_nchw, params, stride):
    dn = ("NHWC", "HWIO", "NHWC")
    hp = lax.Precision.HIGHEST
    x = jnp.transpose(x_nchw, (0, 2, 3, 1))
    y = lax.conv_general_dilated(x, params["w1"], (stride, stride),
                                 ((1, 1), (1, 1)), dimension_numbers=dn,
                                 precision=hp)
    y = jnp.maximum(_ref_bn(y, params["g1"], params["b1"]), 0.0)
    y = lax.conv_general_dilated(y, params["w2"], (1, 1),
                                 ((1, 1), (1, 1)), dimension_numbers=dn,
                                 precision=hp)
    y = _ref_bn(y, params["g2"], params["b2"])
    cin, cout = x.shape[-1], params["w1"].shape[-1]
    if stride != 1 or cin != cout:
        s = lax.conv_general_dilated(x, params["ws"], (stride, stride),
                                     ((0, 0), (0, 0)), dimension_numbers=dn,
                                     precision=hp)
        s = _ref_bn(s, params["gs"], params["bs"])
    else:
        s = x
    out = jnp.maximum(y + s, 0.0)
    return jnp.transpose(out, (0, 3, 1, 2))


def _check(out, ref, name):
    rel = jnp.linalg.norm(out - ref) / jnp.linalg.norm(ref)
    ok = (rel < 2e-2) and jnp.allclose(out, ref, atol=5e-2, rtol=5e-2)
    assert ok, f"{name}: rel L2 err {rel}, max abs err {jnp.max(jnp.abs(out - ref))}"


if __name__ == "__main__":
    key = jax.random.PRNGKey(0)
    kx, kp1, kp2 = jax.random.split(key, 3)

    # 1) downsampling block (stride 2, channel change) -> conv shortcut path
    N, CIN, COUT, H, W, STRIDE = 2, 8, 16, 16, 16, 2
    x = jax.random.normal(kx, (N, CIN, H, W), jnp.float32)
    params = init_params(kp1, CIN, COUT, STRIDE)
    out = jax.block_until_ready(basic_block_forward(x, params, STRIDE))
    ref = jax.block_until_ready(reference_forward(x, params, STRIDE))
    assert out.shape == ref.shape == (N, COUT, H // STRIDE, W // STRIDE)
    _check(out, ref, "downsample block")

    # 2) identity-shortcut block (stride 1, same channels)
    N2, C2, H2, W2 = 2, 16, 8, 8
    x2 = jax.random.normal(kx, (N2, C2, H2, W2), jnp.float32)
    params2 = init_params(kp2, C2, C2, 1)
    out2 = jax.block_until_ready(basic_block_forward(x2, params2, 1))
    ref2 = jax.block_until_ready(reference_forward(x2, params2, 1))
    assert out2.shape == ref2.shape == (N2, C2, H2, W2)
    _check(out2, ref2, "identity block")

    print("KERNEL_OK")
</pallas_src>

<mosaic_0001>
module attributes {stable_mosaic.version = 11 : i64} {
  func.func @_conv_stats_kernel(%arg0: i32, %arg1: i32, %arg2: memref<1x4x9x9x8xbf16, #tpu.memory_space<vmem>>, %arg3: memref<9x8x128xbf16, #tpu.memory_space<vmem>>, %arg4: memref<1x8x8x128xbf16, #tpu.memory_space<vmem>>, %arg5: memref<1x1x128xf32, #tpu.memory_space<vmem>>, %arg6: memref<1x1x128xf32, #tpu.memory_space<vmem>>) attributes {dimension_semantics = [#tpu.dimension_semantics<parallel>, #tpu.dimension_semantics<arbitrary>], iteration_bounds = array<i64: 2, 1>, scalar_prefetch = 0 : i64, scratch_operands = 0 : i64, tpu.core_type = #tpu.core_type<tc>, window_params = [{transform_indices = @transform_0, window_bounds = array<i64: 1, 4, 9, 9, 8>}, {pipeline_mode = #tpu.pipeline_mode<synchronous>, transform_indices = @transform_1, window_bounds = array<i64: 9, 8, 128>}, {transform_indices = @transform_2, window_bounds = array<i64: 1, 8, 8, 128>}, {transform_indices = @transform_3, window_bounds = array<i64: 1, 1, 128>}, {transform_indices = @transform_4, window_bounds = array<i64: 1, 1, 128>}]} {
    %cst = arith.constant 0.000000e+00 : f32
    %0 = vector.broadcast %cst : f32 to vector<64x128xf32>
    %c8_i32 = arith.constant 8 : i32
    %1 = arith.muli %arg1, %c8_i32 : i32
    %c0_i32 = arith.constant 0 : i32
    %2 = arith.addi %1, %c0_i32 : i32
    %c0 = arith.constant 0 : index
    %c0_0 = arith.constant 0 : index
    %3 = arith.index_cast %2 : i32 to index
    %c0_1 = arith.constant 0 : index
    %c0_2 = arith.constant 0 : index
    %4 = vector.load %arg2[%c0, %c0_0, %3, %c0_1, %c0_2] : memref<1x4x9x9x8xbf16, #tpu.memory_space<vmem>>, vector<1x1x8x8x8xbf16>
    %5 = vector.shape_cast %4 : vector<1x1x8x8x8xbf16> to vector<8x8x8xbf16>
    %6 = vector.shape_cast %5 : vector<8x8x8xbf16> to vector<64x8xbf16>
    %c0_3 = arith.constant 0 : index
    %c0_4 = arith.constant 0 : index
    %c0_5 = arith.constant 0 : index
    %7 = vector.load %arg3[%c0_3, %c0_4, %c0_5] : memref<9x8x128xbf16, #tpu.memory_space<vmem>>, vector<1x8x128xbf16>
    %8 = vector.shape_cast %7 : vector<1x8x128xbf16> to vector<8x128xbf16>
    %cst_6 = arith.constant dense<0.000000e+00> : vector<64x128xf32>
    %9 = tpu.matmul %6, %8, %cst_6 {dimension_numbers = #tpu.dot_dimension_numbers<[1], [0], [0], [1], [0, 0, 1, 1], [], []>} : vector<64x8xbf16>, vector<8x128xbf16>, vector<64x128xf32> -> vector<64x128xf32>
    %10 = arith.addf %0, %9 : vector<64x128xf32>
    %c8_i32_7 = arith.constant 8 : i32
    %11 = arith.muli %arg1, %c8_i32_7 : i32
    %c0_i32_8 = arith.constant 0 : i32
    %12 = arith.addi %11, %c0_i32_8 : i32
    %c0_9 = arith.constant 0 : index
    %c1 = arith.constant 1 : index
    %13 = arith.index_cast %12 : i32 to index
    %c0_10 = arith.constant 0 : index
    %c0_11 = arith.constant 0 : index
    %14 = vector.load %arg2[%c0_9, %c1, %13, %c0_10, %c0_11] : memref<1x4x9x9x8xbf16, #tpu.memory_space<vmem>>, vector<1x1x8x8x8xbf16>
    %15 = vector.shape_cast %14 : vector<1x1x8x8x8xbf16> to vector<8x8x8xbf16>
    %16 = vector.shape_cast %15 : vector<8x8x8xbf16> to vector<64x8xbf16>
    %c1_12 = arith.constant 1 : index
    %c0_13 = arith.constant 0 : index
    %c0_14 = arith.constant 0 : index
    %17 = vector.load %arg3[%c1_12, %c0_13, %c0_14] : memref<9x8x128xbf16, #tpu.memory_space<vmem>>, vector<1x8x128xbf16>
    %18 = vector.shape_cast %17 : vector<1x8x128xbf16> to vector<8x128xbf16>
    %cst_15 = arith.constant dense<0.000000e+00> : vector<64x128xf32>
    %19 = tpu.matmul %16, %18, %cst_15 {dimension_numbers = #tpu.dot_dimension_numbers<[1], [0], [0], [1], [0, 0, 1, 1], [], []>} : vector<64x8xbf16>, vector<8x128xbf16>, vector<64x128xf32> -> vector<64x128xf32>
    %20 = arith.addf %10, %19 : vector<64x128xf32>
    %c8_i32_16 = arith.constant 8 : i32
    %21 = arith.muli %arg1, %c8_i32_16 : i32
    %c0_i32_17 = arith.constant 0 : i32
    %22 = arith.addi %21, %c0_i32_17 : i32
    %c0_18 = arith.constant 0 : index
    %c0_19 = arith.constant 0 : index
    %23 = arith.index_cast %22 : i32 to index
    %c1_20 = arith.constant 1 : index
    %c0_21 = arith.constant 0 : index
    %24 = vector.load %arg2[%c0_18, %c0_19, %23, %c1_20, %c0_21] : memref<1x4x9x9x8xbf16, #tpu.memory_space<vmem>>, vector<1x1x8x8x8xbf16>
    %25 = vector.shape_cast %24 : vector<1x1x8x8x8xbf16> to vector<8x8x8xbf16>
    %26 = vector.shape_cast %25 : vector<8x8x8xbf16> to vector<64x8xbf16>
    %c2 = arith.constant 2 : index
    %c0_22 = arith.constant 0 : index
    %c0_23 = arith.constant 0 : index
    %27 = vector.load %arg3[%c2, %c0_22, %c0_23] : memref<9x8x128xbf16, #tpu.memory_space<vmem>>, vector<1x8x128xbf16>
    %28 = vector.shape_cast %27 : vector<1x8x128xbf16> to vector<8x128xbf16>
    %cst_24 = arith.constant dense<0.000000e+00> : vector<64x128xf32>
    %29 = tpu.matmul %26, %28, %cst_24 {dimension_numbers = #tpu.dot_dimension_numbers<[1], [0], [0], [1], [0, 0, 1, 1], [], []>} : vector<64x8xbf16>, vector<8x128xbf16>, vector<64x128xf32> -> vector<64x128xf32>
    %30 = arith.addf %20, %29 : vector<64x128xf32>
    %c8_i32_25 = arith.constant 8 : i32
    %31 = arith.muli %arg1, %c8_i32_25 : i32
    %c0_i32_26 = arith.constant 0 : i32
    %32 = arith.addi %31, %c0_i32_26 : i32
    %c0_27 = arith.constant 0 : index
    %c2_28 = arith.constant 2 : index
    %33 = arith.index_cast %32 : i32 to index
    %c0_29 = arith.constant 0 : index
    %c0_30 = arith.constant 0 : index
    %34 = vector.load %arg2[%c0_27, %c2_28, %33, %c0_29, %c0_30] : memref<1x4x9x9x8xbf16, #tpu.memory_space<vmem>>, vector<1x1x8x8x8xbf16>
    %35 = vector.shape_cast %34 : vector<1x1x8x8x8xbf16> to vector<8x8x8xbf16>
    %36 = vector.shape_cast %35 : vector<8x8x8xbf16> to vector<64x8xbf16>
    %c3 = arith.constant 3 : index
    %c0_31 = arith.constant 0 : index
    %c0_32 = arith.constant 0 : index
    %37 = vector.load %arg3[%c3, %c0_31, %c0_32] : memref<9x8x128xbf16, #tpu.memory_space<vmem>>, vector<1x8x128xbf16>
    %38 = vector.shape_cast %37 : vector<1x8x128xbf16> to vector<8x128xbf16>
    %cst_33 = arith.constant dense<0.000000e+00> : vector<64x128xf32>
    %39 = tpu.matmul %36, %38, %cst_33 {dimension_numbers = #tpu.dot_dimension_numbers<[1], [0], [0], [1], [0, 0, 1, 1], [], []>} : vector<64x8xbf16>, vector<8x128xbf16>, vector<64x128xf32> -> vector<64x128xf32>
    %40 = arith.addf %30, %39 : vector<64x128xf32>
    %c8_i32_34 = arith.constant 8 : i32
    %41 = arith.muli %arg1, %c8_i32_34 : i32
    %c0_i32_35 = arith.constant 0 : i32
    %42 = arith.addi %41, %c0_i32_35 : i32
    %c0_36 = arith.constant 0 : index
    %c3_37 = arith.constant 3 : index
    %43 = arith.index_cast %42 : i32 to index
    %c0_38 = arith.constant 0 : index
    %c0_39 = arith.constant 0 : index
    %44 = vector.load %arg2[%c0_36, %c3_37, %43, %c0_38, %c0_39] : memref<1x4x9x9x8xbf16, #tpu.memory_space<vmem>>, vector<1x1x8x8x8xbf16>
    %45 = vector.shape_cast %44 : vector<1x1x8x8x8xbf16> to vector<8x8x8xbf16>
    %46 = vector.shape_cast %45 : vector<8x8x8xbf16> to vector<64x8xbf16>
    %c4 = arith.constant 4 : index
    %c0_40 = arith.constant 0 : index
    %c0_41 = arith.constant 0 : index
    %47 = vector.load %arg3[%c4, %c0_40, %c0_41] : memref<9x8x128xbf16, #tpu.memory_space<vmem>>, vector<1x8x128xbf16>
    %48 = vector.shape_cast %47 : vector<1x8x128xbf16> to vector<8x128xbf16>
    %cst_42 = arith.constant dense<0.000000e+00> : vector<64x128xf32>
    %49 = tpu.matmul %46, %48, %cst_42 {dimension_numbers = #tpu.dot_dimension_numbers<[1], [0], [0], [1], [0, 0, 1, 1], [], []>} : vector<64x8xbf16>, vector<8x128xbf16>, vector<64x128xf32> -> vector<64x128xf32>
    %50 = arith.addf %40, %49 : vector<64x128xf32>
    %c8_i32_43 = arith.constant 8 : i32
    %51 = arith.muli %arg1, %c8_i32_43 : i32
    %c0_i32_44 = arith.constant 0 : i32
    %52 = arith.addi %51, %c0_i32_44 : i32
    %c0_45 = arith.constant 0 : index
    %c2_46 = arith.constant 2 : index
    %53 = arith.index_cast %52 : i32 to index
    %c1_47 = arith.constant 1 : index
    %c0_48 = arith.constant 0 : index
    %54 = vector.load %arg2[%c0_45, %c2_46, %53, %c1_47, %c0_48] : memref<1x4x9x9x8xbf16, #tpu.memory_space<vmem>>, vector<1x1x8x8x8xbf16>
    %55 = vector.shape_cast %54 : vector<1x1x8x8x8xbf16> to vector<8x8x8xbf16>
    %56 = vector.shape_cast %55 : vector<8x8x8xbf16> to vector<64x8xbf16>
    %c5 = arith.constant 5 : index
    %c0_49 = arith.constant 0 : index
    %c0_50 = arith.constant 0 : index
    %57 = vector.load %arg3[%c5, %c0_49, %c0_50] : memref<9x8x128xbf16, #tpu.memory_space<vmem>>, vector<1x8x128xbf16>
    %58 = vector.shape_cast %57 : vector<1x8x128xbf16> to vector<8x128xbf16>
    %cst_51 = arith.constant dense<0.000000e+00> : vector<64x128xf32>
    %59 = tpu.matmul %56, %58, %cst_51 {dimension_numbers = #tpu.dot_dimension_numbers<[1], [0], [0], [1], [0, 0, 1, 1], [], []>} : vector<64x8xbf16>, vector<8x128xbf16>, vector<64x128xf32> -> vector<64x128xf32>
    %60 = arith.addf %50, %59 : vector<64x128xf32>
    %c8_i32_52 = arith.constant 8 : i32
    %61 = arith.muli %arg1, %c8_i32_52 : i32
    %c1_i32 = arith.constant 1 : i32
    %62 = arith.addi %61, %c1_i32 : i32
    %c0_53 = arith.constant 0 : index
    %c0_54 = arith.constant 0 : index
    %63 = arith.index_cast %62 : i32 to index
    %c0_55 = arith.constant 0 : index
    %c0_56 = arith.constant 0 : index
    %64 = vector.load %arg2[%c0_53, %c0_54, %63, %c0_55, %c0_56] : memref<1x4x9x9x8xbf16, #tpu.memory_space<vmem>>, vector<1x1x8x8x8xbf16>
    %65 = vector.shape_cast %64 : vector<1x1x8x8x8xbf16> to vector<8x8x8xbf16>
    %66 = vector.shape_cast %65 : vector<8x8x8xbf16> to vector<64x8xbf16>
    %c6 = arith.constant 6 : index
    %c0_57 = arith.constant 0 : index
    %c0_58 = arith.constant 0 : index
    %67 = vector.load %arg3[%c6, %c0_57, %c0_58] : memref<9x8x128xbf16, #tpu.memory_space<vmem>>, vector<1x8x128xbf16>
    %68 = vector.shape_cast %67 : vector<1x8x128xbf16> to vector<8x128xbf16>
    %cst_59 = arith.constant dense<0.000000e+00> : vector<64x128xf32>
    %69 = tpu.matmul %66, %68, %cst_59 {dimension_numbers = #tpu.dot_dimension_numbers<[1], [0], [0], [1], [0, 0, 1, 1], [], []>} : vector<64x8xbf16>, vector<8x128xbf16>, vector<64x128xf32> -> vector<64x128xf32>
    %70 = arith.addf %60, %69 : vector<64x128xf32>
    %c8_i32_60 = arith.constant 8 : i32
    %71 = arith.muli %arg1, %c8_i32_60 : i32
    %c1_i32_61 = arith.constant 1 : i32
    %72 = arith.addi %71, %c1_i32_61 : i32
    %c0_62 = arith.constant 0 : index
    %c1_63 = arith.constant 1 : index
    %73 = arith.index_cast %72 : i32 to index
    %c0_64 = arith.constant 0 : index
    %c0_65 = arith.constant 0 : index
    %74 = vector.load %arg2[%c0_62, %c1_63, %73, %c0_64, %c0_65] : memref<1x4x9x9x8xbf16, #tpu.memory_space<vmem>>, vector<1x1x8x8x8xbf16>
    %75 = vector.shape_cast %74 : vector<1x1x8x8x8xbf16> to vector<8x8x8xbf16>
    %76 = vector.shape_cast %75 : vector<8x8x8xbf16> to vector<64x8xbf16>
    %c7 = arith.constant 7 : index
    %c0_66 = arith.constant 0 : index
    %c0_67 = arith.constant 0 : index
    %77 = vector.load %arg3[%c7, %c0_66, %c0_67] : memref<9x8x128xbf16, #tpu.memory_space<vmem>>, vector<1x8x128xbf16>
    %78 = vector.shape_cast %77 : vector<1x8x128xbf16> to vector<8x128xbf16>
    %cst_68 = arith.constant dense<0.000000e+00> : vector<64x128xf32>
    %79 = tpu.matmul %76, %78, %cst_68 {dimension_numbers = #tpu.dot_dimension_numbers<[1], [0], [0], [1], [0, 0, 1, 1], [], []>} : vector<64x8xbf16>, vector<8x128xbf16>, vector<64x128xf32> -> vector<64x128xf32>
    %80 = arith.addf %70, %79 : vector<64x128xf32>
    %c8_i32_69 = arith.constant 8 : i32
    %81 = arith.muli %arg1, %c8_i32_69 : i32
    %c1_i32_70 = arith.constant 1 : i32
    %82 = arith.addi %81, %c1_i32_70 : i32
    %c0_71 = arith.constant 0 : index
    %c0_72 = arith.constant 0 : index
    %83 = arith.index_cast %82 : i32 to index
    %c1_73 = arith.constant 1 : index
    %c0_74 = arith.constant 0 : index
    %84 = vector.load %arg2[%c0_71, %c0_72, %83, %c1_73, %c0_74] : memref<1x4x9x9x8xbf16, #tpu.memory_space<vmem>>, vector<1x1x8x8x8xbf16>
    %85 = vector.shape_cast %84 : vector<1x1x8x8x8xbf16> to vector<8x8x8xbf16>
    %86 = vector.shape_cast %85 : vector<8x8x8xbf16> to vector<64x8xbf16>
    %c8 = arith.constant 8 : index
    %c0_75 = arith.constant 0 : index
    %c0_76 = arith.constant 0 : index
    %87 = vector.load %arg3[%c8, %c0_75, %c0_76] : memref<9x8x128xbf16, #tpu.memory_space<vmem>>, vector<1x8x128xbf16>
    %88 = vector.shape_cast %87 : vector<1x8x128xbf16> to vector<8x128xbf16>
    %cst_77 = arith.constant dense<0.000000e+00> : vector<64x128xf32>
    %89 = tpu.matmul %86, %88, %cst_77 {dimension_numbers = #tpu.dot_dimension_numbers<[1], [0], [0], [1], [0, 0, 1, 1], [], []>} : vector<64x8xbf16>, vector<8x128xbf16>, vector<64x128xf32> -> vector<64x128xf32>
    %90 = arith.addf %80, %89 : vector<64x128xf32>
    %c0_i32_78 = arith.constant 0 : i32
    %91 = arith.cmpi eq, %arg1, %c0_i32_78 : i32
    %92 = arith.extui %91 : i1 to i32
    %c0_i32_79 = arith.constant 0 : i32
    %93 = arith.cmpi ne, %92, %c0_i32_79 : i32
    scf.if %93 {
      %cst_98 = arith.constant 0.000000e+00 : f32
      %110 = vector.broadcast %cst_98 : f32 to vector<1x1x128xf32>
      %c0_99 = arith.constant 0 : index
      %c0_100 = arith.constant 0 : index
      %c0_101 = arith.constant 0 : index
      %111 = vector.load %arg5[%c0_99, %c0_100, %c0_101] : memref<1x1x128xf32, #tpu.memory_space<vmem>>, vector<1x1x128xf32>
      tpu.vector_store %arg5[%c0_99, %c0_100, %c0_101], %110 {strides = array<i32>} : memref<1x1x128xf32, #tpu.memory_space<vmem>>, vector<1x1x128xf32>,
      %cst_102 = arith.constant 0.000000e+00 : f32
      %112 = vector.broadcast %cst_102 : f32 to vector<1x1x128xf32>
      %c0_103 = arith.constant 0 : index
      %c0_104 = arith.constant 0 : index
      %c0_105 = arith.constant 0 : index
      %113 = vector.load %arg6[%c0_103, %c0_104, %c0_105] : memref<1x1x128xf32, #tpu.memory_space<vmem>>, vector<1x1x128xf32>
      tpu.vector_store %arg6[%c0_103, %c0_104, %c0_105], %112 {strides = array<i32>} : memref<1x1x128xf32, #tpu.memory_space<vmem>>, vector<1x1x128xf32>,
    } else {
    }
    %c0_80 = arith.constant 0 : index
    %c0_81 = arith.constant 0 : index
    %c0_82 = arith.constant 0 : index
    %94 = vector.load %arg5[%c0_80, %c0_81, %c0_82] : memref<1x1x128xf32, #tpu.memory_space<vmem>>, vector<1x1x128xf32>
    %cst_83 = arith.constant dense<0.000000e+00> : vector<128xf32>
    %95 = vector.multi_reduction <add>, %90, %cst_83 [0] : vector<64x128xf32> to vector<128xf32>
    %96 = vector.shape_cast %95 : vector<128xf32> to vector<1x128xf32>
    %97 = vector.shape_cast %96 : vector<1x128xf32> to vector<1x1x128xf32>
    %98 = arith.addf %94, %97 : vector<1x1x128xf32>
    %c0_84 = arith.constant 0 : index
    %c0_85 = arith.constant 0 : index
    %c0_86 = arith.constant 0 : index
    %99 = vector.load %arg5[%c0_84, %c0_85, %c0_86] : memref<1x1x128xf32, #tpu.memory_space<vmem>>, vector<1x1x128xf32>
    tpu.vector_store %arg5[%c0_84, %c0_85, %c0_86], %98 {strides = array<i32>} : memref<1x1x128xf32, #tpu.memory_space<vmem>>, vector<1x1x128xf32>,
    %c0_87 = arith.constant 0 : index
    %c0_88 = arith.constant 0 : index
    %c0_89 = arith.constant 0 : index
    %100 = vector.load %arg6[%c0_87, %c0_88, %c0_89] : memref<1x1x128xf32, #tpu.memory_space<vmem>>, vector<1x1x128xf32>
    %101 = arith.mulf %90, %90 : vector<64x128xf32>
    %cst_90 = arith.constant dense<0.000000e+00> : vector<128xf32>
    %102 = vector.multi_reduction <add>, %101, %cst_90 [0] : vector<64x128xf32> to vector<128xf32>
    %103 = vector.shape_cast %102 : vector<128xf32> to vector<1x128xf32>
    %104 = vector.shape_cast %103 : vector<1x128xf32> to vector<1x1x128xf32>
    %105 = arith.addf %100, %104 : vector<1x1x128xf32>
    %c0_91 = arith.constant 0 : index
    %c0_92 = arith.constant 0 : index
    %c0_93 = arith.constant 0 : index
    %106 = vector.load %arg6[%c0_91, %c0_92, %c0_93] : memref<1x1x128xf32, #tpu.memory_space<vmem>>, vector<1x1x128xf32>
    tpu.vector_store %arg6[%c0_91, %c0_92, %c0_93], %105 {strides = array<i32>} : memref<1x1x128xf32, #tpu.memory_space<vmem>>, vector<1x1x128xf32>,
    %107 = vector.shape_cast %90 : vector<64x128xf32> to vector<1x8x8x128xf32>
    %108 = arith.truncf %107 : vector<1x8x8x128xf32> to vector<1x8x8x128xbf16>
    %c0_94 = arith.constant 0 : index
    %c0_95 = arith.constant 0 : index
    %c0_96 = arith.constant 0 : index
    %c0_97 = arith.constant 0 : index
    %109 = vector.load %arg4[%c0_94, %c0_95, %c0_96, %c0_97] : memref<1x8x8x128xbf16, #tpu.memory_space<vmem>>, vector<1x8x8x128xbf16>
    tpu.vector_store %arg4[%c0_94, %c0_95, %c0_96, %c0_97], %108 {strides = array<i32>} : memref<1x8x8x128xbf16, #tpu.memory_space<vmem>>, vector<1x8x8x128xbf16>,
    return
  }
  func.func @transform_0(%arg0: i32, %arg1: i32) -> (i32, i32, i32, i32, i32) {
    %c0_i32 = arith.constant 0 : i32
    %c0_i32_0 = arith.constant 0 : i32
    %c0_i32_1 = arith.constant 0 : i32
    %c0_i32_2 = arith.constant 0 : i32
    %c0_i32_3 = arith.constant 0 : i32
    return %arg0, %c0_i32, %c0_i32_0, %c0_i32_1, %c0_i32_2 : i32, i32, i32, i32, i32
  }
  func.func @transform_1(%arg0: i32, %arg1: i32) -> (i32, i32, i32) {
    %c0_i32 = arith.constant 0 : i32
    %c0_i32_0 = arith.constant 0 : i32
    %c0_i32_1 = arith.constant 0 : i32
    %c0_i32_2 = arith.constant 0 : i32
    return %c0_i32, %c0_i32_0, %c0_i32_1 : i32, i32, i32
  }
  func.func @transform_2(%arg0: i32, %arg1: i32) -> (i32, i32, i32, i32) {
    %c0_i32 = arith.constant 0 : i32
    %c0_i32_0 = arith.constant 0 : i32
    %c0_i32_1 = arith.constant 0 : i32
    return %arg0, %arg1, %c0_i32, %c0_i32_0 : i32, i32, i32, i32
  }
  func.func @transform_3(%arg0: i32, %arg1: i32) -> (i32, i32, i32) {
    %c0_i32 = arith.constant 0 : i32
    %c0_i32_0 = arith.constant 0 : i32
    %c0_i32_1 = arith.constant 0 : i32
    return %arg0, %c0_i32, %c0_i32_0 : i32, i32, i32
  }
  func.func @transform_4(%arg0: i32, %arg1: i32) -> (i32, i32, i32) {
    %c0_i32 = arith.constant 0 : i32
    %c0_i32_0 = arith.constant 0 : i32
    %c0_i32_1 = arith.constant 0 : i32
    return %arg0, %c0_i32, %c0_i32_0 : i32, i32, i32
  }
}

</mosaic_0001>

<llo_original>
// kernel: tpu_custom_call.1
$region0: #{tpu_custom_call.1}
  #allocation0 [shape = 'u32[]', space=smem, size = 0x4, offset = 0x4, fixed_abs, tag = 'smem constant byte address 0x4 - core index']
  #allocation1 [shape = 'u32[144,128]{1,0:T(1,128)}', space=vmem, size = 0x12000, scoped, tag = 'internal scratch']
  %s0 = inlined_call_operand.vmem [shape: bf16[2,4,9,9,8], index: 0, kind: input, shape index: {}]
  %s1 = inlined_call_operand.vmem [shape: bf16[9,8,128], index: 1, kind: input, shape index: {}]
  %s2 = inlined_call_operand.hbm [shape: bf16[2,8,8,128], index: 2, kind: output, shape index: {0}]
  %s3 = inlined_call_operand.hbm [shape: f32[2,1,128], index: 3, kind: output, shape index: {1}]
  %s4 = inlined_call_operand.hbm [shape: f32[2,1,128], index: 4, kind: output, shape index: {2}]
  %5 = xla_tuple %s2, %s3, %s4
  %s6 = sld [smem:[#allocation0]]
  $region61: #{tpu_custom_call.1} parent=0
    _
  %s8 = ssub.s32 1, %s6
  %s9 = scalar_select 0, %s8, %s6
  $region1: #{tpu_custom_call.1} parent=0
    #allocation2 [shape = 'u8[32768]{0}', space=vmem, size = 0x8000, scoped, tag = 'output window, operand 0']
    #allocation3 [shape = 's32[2]{0}', space=sflag, size = 0x8, scoped, tag = 'scoped memory for tpu_custom_call.1']
    #allocation4 [shape = 'u8[1024]{0}', space=vmem, size = 0x400, scoped, tag = 'output window, operand 1']
    #allocation5 [shape = 's32[2]{0}', space=sflag, size = 0x8, scoped, tag = 'scoped memory for tpu_custom_call.1']
    #allocation6 [shape = 'u8[1024]{0}', space=vmem, size = 0x400, scoped, tag = 'output window, operand 2']
    %10 = vsyncpa [#allocation3], 0
    %s11 = scalar_lea.sflag [#allocation3], 1
    %12 = vsyncpa %s11, 0
    %13 = vsyncpa [#allocation5], 0
    %s14 = scalar_lea.sflag [#allocation5], 1
    %15 = vsyncpa %s14, 0
    loop: start=0, step=1, limit=4
    $region2: #{tpu_custom_call.1} parent=1 // loop_pre_header
      _
    $region3: #{tpu_custom_call.1} parent=1 // loop_header
      %s17 = sphi 0, %s21
      %p18 = scmp.ge.s32.totalorder %s17, 4
      %s24 = sphi 0, %s36
      %s25 = sphi 0, %s32
      %s26 = sphi 0, %s24
      %s27 = sphi 0, %s25
      %s28 = sphi 0, %s26
      %s29 = sphi 0, %s27
      %s39 = sphi 0, %s41
      %s42 = sphi 0, %s39
      %s43 = sphi 0, %s42
      %s59 = sphi 0, %s43
      %s63 = sphi 0, %s63
      %s65 = sphi 0, %s63
      %s66 = sphi 0, %s65
      %s80 = sphi 0, %s66
      %s88 = sphi 0, %s90
      %s91 = sphi 0, %s88
      %s92 = sphi 0, %s91
      %s108 = sphi 0, %s92
      %s114 = sphi 0, %s116
      %s117 = sphi 0, %s114
      %s118 = sphi 0, %s117
      %s134 = sphi 0, %s118
      %s140 = sphi 0, %s142
      %s143 = sphi 0, %s140
      %s144 = sphi 0, %s143
      %s160 = sphi 0, %s144
    $region4: #{tpu_custom_call.1} parent=1 // loop_header_branch
      %20 = sbr.rel (%p18) target = $region8
    $region5: #{tpu_custom_call.1} parent=1 // loop_body
      %s22 = ssub.s32 %s17, 1
      %s23 = ssub.s32 %s17, 2
      %s30 = sadd.s32 1, %s25
      %p31 = scmp.ge.s32.totalorder %s30, 1
      %s32 = scalar_select %p31, 0, %s30
      %s33 = sadd.s32 1, %s24
      %s34 = scalar_select %p31, %s33, %s24
      %p35 = scmp.ge.s32.totalorder %s34, 2
      %s36 = scalar_select %p35, 0, %s34
      %s37 = ssub.s32 %s24, %s36
      %p38 = scmp.eq.s32.totalorder %s37, 0
      %s40 = sadd.s32 %s39, 1
      %s41 = scalar_select %p38, %s39, %s40
      %p44 = pneg %p38
      %p45 = scmp.eq.s32.totalorder %s17, 1
      %p46 = por %p44, %p45
      %p47 = scmp.ne.s32.totalorder %s39, %s42
      %p48 = scmp.eq.s32.totalorder %s17, 0
      %p49 = por %p47, %p48
      %p50 = scmp.ne.s32.totalorder %s39, %s42
      %p51 = scmp.eq.s32.totalorder %s22, 1
      %p52 = por %p50, %p51
      %p53 = scmp.ne.s32.totalorder %s42, %s43
      %p54 = scmp.eq.s32.totalorder %s22, 0
      %p55 = por %p53, %p54
      %p56 = scmp.ne.s32.totalorder %s42, %s43
      %p57 = scmp.eq.s32.totalorder %s23, 1
      %p58 = por %p56, %p57
      %p60 = scmp.ne.s32.totalorder %s43, %s59
      %p61 = scmp.eq.s32.totalorder %s23, 0
      %p62 = por %p60, %p61
      %s64 = sadd.s32 %s63, 1
      %p67 = scmp.eq.s32.totalorder %s17, 1
      %p68 = scmp.ne.s32.totalorder %s63, %s65
      %p69 = scmp.eq.s32.totalorder %s17, 0
      %p70 = por %p68, %p69
      %p71 = scmp.ne.s32.totalorder %s63, %s65
      %p72 = scmp.eq.s32.totalorder %s22, 1
      %p73 = por %p71, %p72
      %p74 = scmp.ne.s32.totalorder %s65, %s66
      %p75 = scmp.eq.s32.totalorder %s22, 0
      %p76 = por %p74, %p75
      %p77 = scmp.ne.s32.totalorder %s65, %s66
      %p78 = scmp.eq.s32.totalorder %s23, 1
      %p79 = por %p77, %p78
      %p81 = scmp.ne.s32.totalorder %s66, %s80
      %p82 = scmp.eq.s32.totalorder %s23, 0
      %p83 = por %p81, %p82
      %s84 = ssub.s32 %s24, %s36
      %s85 = ssub.s32 %s25, %s32
      %s86 = sor.u32 %s84, %s85
      %p87 = scmp.eq.s32.totalorder %s86, 0
      %s89 = sadd.s32 %s88, 1
      %s90 = scalar_select %p87, %s88, %s89
      %p93 = pneg %p87
      %p94 = scmp.eq.s32.totalorder %s17, 1
      %p95 = por %p93, %p94
      %p96 = scmp.ne.s32.totalorder %s88, %s91
      %p97 = scmp.eq.s32.totalorder %s17, 0
      %p98 = por %p96, %p97
      %p99 = scmp.ne.s32.totalorder %s88, %s91
      %p100 = scmp.eq.s32.totalorder %s22, 1
      %p101 = por %p99, %p100
      %p102 = scmp.ne.s32.totalorder %s91, %s92
      %p103 = scmp.eq.s32.totalorder %s22, 0
      %p104 = por %p102, %p103
      %p105 = scmp.ne.s32.totalorder %s91, %s92
      %p106 = scmp.eq.s32.totalorder %s23, 1
      %p107 = por %p105, %p106
      %p109 = scmp.ne.s32.totalorder %s92, %s108
      %p110 = scmp.eq.s32.totalorder %s23, 0
      %p111 = por %p109, %p110
      %s112 = ssub.s32 %s24, %s36
      %p113 = scmp.eq.s32.totalorder %s112, 0
      %s115 = sadd.s32 %s114, 1
      %s116 = scalar_select %p113, %s114, %s115
      %p119 = pneg %p113
      %p120 = scmp.eq.s32.totalorder %s17, 1
      %p121 = por %p119, %p120
      %p122 = scmp.ne.s32.totalorder %s114, %s117
      %p123 = scmp.eq.s32.totalorder %s17, 0
      %p124 = por %p122, %p123
      %p125 = scmp.ne.s32.totalorder %s114, %s117
      %p126 = scmp.eq.s32.totalorder %s22, 1
      %p127 = por %p125, %p126
      %p128 = scmp.ne.s32.totalorder %s117, %s118
      %p129 = scmp.eq.s32.totalorder %s22, 0
      %p130 = por %p128, %p129
      %p131 = scmp.ne.s32.totalorder %s117, %s118
      %p132 = scmp.eq.s32.totalorder %s23, 1
      %p133 = por %p131, %p132
      %p135 = scmp.ne.s32.totalorder %s118, %s134
      %p136 = scmp.eq.s32.totalorder %s23, 0
      %p137 = por %p135, %p136
      %s138 = ssub.s32 %s24, %s36
      %p139 = scmp.eq.s32.totalorder %s138, 0
      %s141 = sadd.s32 %s140, 1
      %s142 = scalar_select %p139, %s140, %s141
      %p145 = pneg %p139
      %p146 = scmp.eq.s32.totalorder %s17, 1
      %p147 = por %p145, %p146
      %p148 = scmp.ne.s32.totalorder %s140, %s143
      %p149 = scmp.eq.s32.totalorder %s17, 0
      %p150 = por %p148, %p149
      %p151 = scmp.ne.s32.totalorder %s140, %s143
      %p152 = scmp.eq.s32.totalorder %s22, 1
      %p153 = por %p151, %p152
      %p154 = scmp.ne.s32.totalorder %s143, %s144
      %p155 = scmp.eq.s32.totalorder %s22, 0
      %p156 = por %p154, %p155
      %p157 = scmp.ne.s32.totalorder %s143, %s144
      %p158 = scmp.eq.s32.totalorder %s23, 1
      %p159 = por %p157, %p158
      %p161 = scmp.ne.s32.totalorder %s144, %s160
      %p162 = scmp.eq.s32.totalorder %s23, 0
      %p163 = por %p161, %p162
      %p164 = scmp.le.s32.totalorder 1, %s17
      %p165 = scmp.lt.s32.totalorder %s17, 3
      %p166 = pnand %p164, %p165
      %p167 = pneg %p166
      // Predicated region
      $region9: #{tpu_custom_call.1} parent=5 // pred_check
        _
      $region10: #{tpu_custom_call.1} parent=5 // pred_check_branch
        %169 = sbr.rel (%p166) target = $region12
      $region11: #{tpu_custom_call.1} parent=5 // pred_region
        %s170 = ssub.s32 %s17, 1
        // Predicated region
        $region13: #{tpu_custom_call.1} parent=11 // pred_check
          %p171 = pneg %p76
        $region14: #{tpu_custom_call.1} parent=11 // pred_check_branch
          %173 = sbr.rel (%p171) target = $region16
        $region15: #{tpu_custom_call.1} parent=11 // pred_region
          _
        $region16: #{tpu_custom_call.1} parent=11 // pred_fallthru
          _
      $region12: #{tpu_custom_call.1} parent=5 // pred_fallthru
        _
      %p174 = scmp.lt.s32.totalorder %s17, 2
      // Predicated region
      $region17: #{tpu_custom_call.1} parent=5 // pred_check
        %p175 = pneg %p174
      $region18: #{tpu_custom_call.1} parent=5 // pred_check_branch
        %177 = sbr.rel (%p175) target = $region20
      $region19: #{tpu_custom_call.1} parent=5 // pred_region
        // Predicated region
        $region21: #{tpu_custom_call.1} parent=19 // pred_check
          %p178 = pneg %p49
        $region22: #{tpu_custom_call.1} parent=19 // pred_check_branch
          %180 = sbr.rel (%p178) target = $region24
        $region23: #{tpu_custom_call.1} parent=19 // pred_region
          %p181 = scmp.lt.s32.totalorder %s24, 1
          %s182 = scalar_select %p181, %s24, 1
          %s183 = smul.addr %s182, 72
          %s184 = smul.addr %s183, 4
          %s185 = scalar_lea.vmem %s0, %s184
        $region24: #{tpu_custom_call.1} parent=19 // pred_fallthru
          _
      $region20: #{tpu_custom_call.1} parent=5 // pred_fallthru
        _
      %p186 = scmp.le.s32.totalorder 1, %s17
      %p187 = scmp.lt.s32.totalorder %s17, 3
      %p188 = pnand %p186, %p187
      %p189 = pneg %p188
      // Predicated region
      $region25: #{tpu_custom_call.1} parent=5 // pred_check
        _
      $region26: #{tpu_custom_call.1} parent=5 // pred_check_branch
        %191 = sbr.rel (%p188) target = $region28
      $region27: #{tpu_custom_call.1} parent=5 // pred_region
        %s192 = ssub.s32 %s17, 1
        %p193 = scmp.lt.s32.totalorder %s26, 1
        %s194 = scalar_select %p193, %s26, 1
        %s195 = smul.addr %s194, 72
        %s196 = smul.addr %s195, 4
        %s197 = scalar_lea.vmem %s0, %s196
        %p198 = pneg %p55
        %p199 = pneg %p52
        %p200 = pneg %p76
        %p201 = pneg %p73
        %p202 = pneg %p104
        %p203 = pneg %p101
        %s204 = sand.u32 %s91, 1
        %s205 = scalar_lea.sflag [#allocation3], %s204
        %s206 = sand.u32 %s91, 1
        %s207 = smul.addr %s206, 32
        %s208 = scalar_lea.vmem [#allocation2], %s207
        %p209 = pneg %p130
        %p210 = pneg %p127
        %s211 = sand.u32 %s22, 1
        %s212 = scalar_lea.sflag [#allocation5], %s211
        %s213 = sand.u32 %s117, 1
        %s214 = scalar_lea.vmem [#allocation4], %s213
        %p215 = pneg %p156
        %p216 = pneg %p153
        %s217 = sand.u32 %s22, 1
        %s218 = scalar_lea.sflag [#allocation5], %s217
        %s219 = sand.u32 %s143, 1
        %s220 = scalar_lea.vmem [#allocation6], %s219
        %p221 = scmp.lt.s32.totalorder %s26, 1
        %s222 = scalar_select %p221, %s26, 1
        %s223 = smul.addr %s222, 72
        %s224 = smul.addr %s223, 4
        %s225 = scalar_lea.vmem %s0, %s224
        %s226 = smul.u32 8, %s27
        %s228 = smul.u32 %s27, 8
        %s229 = smul.u32 %s228, 2
        %s230 = smul.addr %s229, 4
        %s231 = scalar_lea.vmem %s225, %s230
        %v232 = vld [vmem:[%s231] sm:$0xf]
        %v233 = vld [vmem:[%s231 + $0x8] sm:$0xf]
        %v234 = vld [vmem:[%s231 + $0x10] sm:$0xf]
        %v235 = vld [vmem:[%s231 + $0x18] sm:$0xf]
        %v236 = vld [vmem:[%s231 + $0x20] sm:$0xf]
        %v237 = vld [vmem:[%s231 + $0x28] sm:$0xf]
        %v238 = vld [vmem:[%s231 + $0x30] sm:$0xf]
        %v239 = vld [vmem:[%s231 + $0x38] sm:$0xf]
        %v240 = vld [vmem:[%s1] sm:$0xf]
        %s241 = sadd.s32 %s229, 18
        %s242 = smul.addr %s241, 4
        %s243 = scalar_lea.vmem %s225, %s242
        %v244 = vld [vmem:[%s243] sm:$0xf]
        %v245 = vld [vmem:[%s243 + $0x8] sm:$0xf]
        %v246 = vld [vmem:[%s243 + $0x10] sm:$0xf]
        %v247 = vld [vmem:[%s243 + $0x18] sm:$0xf]
        %v248 = vld [vmem:[%s243 + $0x20] sm:$0xf]
        %v249 = vld [vmem:[%s243 + $0x28] sm:$0xf]
        %v250 = vld [vmem:[%s243 + $0x30] sm:$0xf]
        %v251 = vld [vmem:[%s243 + $0x38] sm:$0xf]
        %s252 = scalar_lea.vmem %s1, 4
        %v253 = vld [vmem:[%s252] sm:$0xf]
        %v262 = vunpack.c.l.b16 %v244
        %v263 = vunpack.c.l.b16 %v245
        %v264 = vunpack.c.l.b16 %v246
        %v265 = vunpack.c.l.b16 %v247
        %v266 = vunpack.c.l.b16 %v248
        %v267 = vunpack.c.l.b16 %v249
        %v268 = vunpack.c.l.b16 %v250
        %v269 = vunpack.c.l.b16 %v251
        %v270 = vpack.c.b16 %v263, %v262
        %v271 = vpack.c.b16 %v265, %v264
        %v272 = vpack.c.b16 %v267, %v266
        %v273 = vpack.c.b16 %v269, %v268
        %vm274 = vcmask 64512
        %v276 = vsel %vm274, %v270, 0
        %v279 = vsel %vm274, %v271, 0
        %v282 = vsel %vm274, %v272, 0
        %v285 = vsel %vm274, %v273, 0
        %vm287 = vcmask 1043456
        %v289 = vsel %vm287, %v253, 0
        %291 = vmatprep.subr.bf16.mxu0 0
        %292 = vmatpush1.bf16.msra.mxu0 %v289
        %293 = vmatprep.subr.bf16.mxu0 0
        %294 = vmatpush1.bf16.msra.mxu0 0
        %295 = vmatprep.subr.bf16.mxu0 0
        %296 = vmatpush1.bf16.msra.mxu0 0
        %297 = vmatprep.subr.bf16.mxu0 0
        %298 = vmatpush1.bf16.msra.mxu0 0
        %299 = vmatprep.subr.bf16.mxu0 0
        %300 = vmatpush1.bf16.msra.mxu0 0
        %301 = vmatprep.subr.bf16.mxu0 0
        %302 = vmatpush1.bf16.msra.mxu0 0
        %303 = vmatprep.subr.bf16.mxu0 0
        %304 = vmatpush1.bf16.msra.mxu0 0
        %305 = vmatprep.subr.bf16.mxu0 0
        %306 = vmatpush1.bf16.msra.mxu0 0
        %307 = vmatprep.subr.bf16.mxu0 0
        %308 = vmatpush1.bf16.msra.mxu0 0
        %309 = vmatprep.subr.bf16.mxu0 0
        %310 = vmatpush1.bf16.msra.mxu0 0
        %311 = vmatprep.subr.bf16.mxu0 0
        %312 = vmatpush1.bf16.msra.mxu0 0
        %313 = vmatprep.subr.bf16.mxu0 0
        %314 = vmatpush1.bf16.msra.mxu0 0
        %315 = vmatprep.subr.bf16.mxu0 0
        %316 = vmatpush1.bf16.msra.mxu0 0
        %317 = vmatprep.subr.bf16.mxu0 0
        %318 = vmatpush1.bf16.msra.mxu0 0
        %319 = vmatprep.subr.bf16.mxu0 0
        %320 = vmatpush1.bf16.msra.mxu0 0
        %321 = vmatprep.subr.bf16.mxu0 0
        %322 = vmatpush1.bf16.msra.mxu0 0
        %323 = vmatprep.mubr.bf16.mxu0 0
        %324 = vmatmul.mubr.bf16.gmra.mrb[0].mxu0 %v276
        %v325 = vpop.f32.mrb[0].mxu0
        %v326 = vadd.f32 0.0, %v325
        %v327 = vpop.f32.mrb[0].mxu0
        %v328 = vpop.f32.mrb[0].mxu0
        %v329 = vadd.f32 0.0, %v328
        %v330 = vpop.f32.mrb[0].mxu0
        %331 = vmatprep.mubr.bf16.mxu0 0
        %332 = vmatmul.mubr.bf16.gmra.mrb[0].mxu0 %v279
        %v333 = vpop.f32.mrb[0].mxu0
        %v334 = vadd.f32 0.0, %v333
        %v335 = vpop.f32.mrb[0].mxu0
        %v336 = vpop.f32.mrb[0].mxu0
        %v337 = vadd.f32 0.0, %v336
        %v338 = vpop.f32.mrb[0].mxu0
        %339 = vmatprep.mubr.bf16.mxu0 0
        %340 = vmatmul.mubr.bf16.gmra.mrb[0].mxu0 %v282
        %v341 = vpop.f32.mrb[0].mxu0
        %v342 = vadd.f32 0.0, %v341
        %v343 = vpop.f32.mrb[0].mxu0
        %v344 = vpop.f32.mrb[0].mxu0
        %v345 = vadd.f32 0.0, %v344
        %v346 = vpop.f32.mrb[0].mxu0
        %347 = vmatprep.mubr.bf16.mxu0 0
        %348 = vmatmul.mubr.bf16.gmra.mrb[0].mxu0 %v285
        %v349 = vpop.f32.mrb[0].mxu0
        %v350 = vadd.f32 0.0, %v349
        %v351 = vpop.f32.mrb[0].mxu0
        %v352 = vpop.f32.mrb[0].mxu0
        %v353 = vadd.f32 0.0, %v352
        %v354 = vpop.f32.mrb[0].mxu0
        %355 = vdwg.mxu0
        %v364 = vunpack.c.l.b16 %v232
        %v365 = vunpack.c.l.b16 %v233
        %v366 = vunpack.c.l.b16 %v234
        %v367 = vunpack.c.l.b16 %v235
        %v368 = vunpack.c.l.b16 %v236
        %v369 = vunpack.c.l.b16 %v237
        %v370 = vunpack.c.l.b16 %v238
        %v371 = vunpack.c.l.b16 %v239
        %v372 = vpack.c.b16 %v365, %v364
        %v373 = vpack.c.b16 %v367, %v366
        %v374 = vpack.c.b16 %v369, %v368
        %v375 = vpack.c.b16 %v371, %v370
        %v377 = vsel %vm274, %v372, 0
        %v380 = vsel %vm274, %v373, 0
        %v383 = vsel %vm274, %v374, 0
        %v386 = vsel %vm274, %v375, 0
        %v389 = vsel %vm287, %v240, 0
        %391 = vmatprep.subr.bf16.mxu0 0
        %392 = vmatpush1.bf16.msra.mxu0 %v389
        %393 = vmatprep.subr.bf16.mxu0 0
        %394 = vmatpush1.bf16.msra.mxu0 0
        %395 = vmatprep.subr.bf16.mxu0 0
        %396 = vmatpush1.bf16.msra.mxu0 0
        %397 = vmatprep.subr.bf16.mxu0 0
        %398 = vmatpush1.bf16.msra.mxu0 0
        %399 = vmatprep.subr.bf16.mxu0 0
        %400 = vmatpush1.bf16.msra.mxu0 0
        %401 = vmatprep.subr.bf16.mxu0 0
        %402 = vmatpush1.bf16.msra.mxu0 0
        %403 = vmatprep.subr.bf16.mxu0 0
        %404 = vmatpush1.bf16.msra.mxu0 0
        %405 = vmatprep.subr.bf16.mxu0 0
        %406 = vmatpush1.bf16.msra.mxu0 0
        %407 = vmatprep.subr.bf16.mxu0 0
        %408 = vmatpush1.bf16.msra.mxu0 0
        %409 = vmatprep.subr.bf16.mxu0 0
        %410 = vmatpush1.bf16.msra.mxu0 0
        %411 = vmatprep.subr.bf16.mxu0 0
        %412 = vmatpush1.bf16.msra.mxu0 0
        %413 = vmatprep.subr.bf16.mxu0 0
        %414 = vmatpush1.bf16.msra.mxu0 0
        %415 = vmatprep.subr.bf16.mxu0 0
        %416 = vmatpush1.bf16.msra.mxu0 0
        %417 = vmatprep.subr.bf16.mxu0 0
        %418 = vmatpush1.bf16.msra.mxu0 0
        %419 = vmatprep.subr.bf16.mxu0 0
        %420 = vmatpush1.bf16.msra.mxu0 0
        %421 = vmatprep.subr.bf16.mxu0 0
        %422 = vmatpush1.bf16.msra.mxu0 0
        %423 = vmatprep.mubr.bf16.mxu0 0
        %424 = vmatmul.mubr.bf16.gmra.mrb[0].mxu0 %v377
        %v425 = vpop.f32.mrb[0].mxu0
        %v426 = vadd.f32 %v326, %v425
        %v427 = vpop.f32.mrb[0].mxu0
        %v428 = vpop.f32.mrb[0].mxu0
        %v429 = vadd.f32 %v329, %v428
        %v430 = vpop.f32.mrb[0].mxu0
        %431 = vmatprep.mubr.bf16.mxu0 0
        %432 = vmatmul.mubr.bf16.gmra.mrb[0].mxu0 %v380
        %v433 = vpop.f32.mrb[0].mxu0
        %v434 = vadd.f32 %v334, %v433
        %v435 = vpop.f32.mrb[0].mxu0
        %v436 = vpop.f32.mrb[0].mxu0
        %v437 = vadd.f32 %v337, %v436
        %v438 = vpop.f32.mrb[0].mxu0
        %439 = vmatprep.mubr.bf16.mxu0 0
        %440 = vmatmul.mubr.bf16.gmra.mrb[0].mxu0 %v383
        %v441 = vpop.f32.mrb[0].mxu0
        %v442 = vadd.f32 %v342, %v441
        %v443 = vpop.f32.mrb[0].mxu0
        %v444 = vpop.f32.mrb[0].mxu0
        %v445 = vadd.f32 %v345, %v444
        %v446 = vpop.f32.mrb[0].mxu0
        %447 = vmatprep.mubr.bf16.mxu0 0
        %448 = vmatmul.mubr.bf16.gmra.mrb[0].mxu0 %v386
        %v449 = vpop.f32.mrb[0].mxu0
        %v450 = vadd.f32 %v350, %v449
        %v451 = vpop.f32.mrb[0].mxu0
        %v452 = vpop.f32.mrb[0].mxu0
        %v453 = vadd.f32 %v353, %v452
        %v454 = vpop.f32.mrb[0].mxu0
        %455 = vdwg.mxu0
        %v456 = vld [vmem:[%s231] sm:$0xf]
        %v457 = vld [vmem:[%s231 + $0x4] sm:$0x1]
        %v458 = vld [vmem:[%s231 + $0x8] sm:$0xf]
        %v459 = vld [vmem:[%s231 + $0xc] sm:$0x1]
        %v460 = vld [vmem:[%s231 + $0x10] sm:$0xf]
        %v461 = vld [vmem:[%s231 + $0x14] sm:$0x1]
        %v462 = vld [vmem:[%s231 + $0x18] sm:$0xf]
        %v463 = vld [vmem:[%s231 + $0x1c] sm:$0x1]
        %v464 = vld [vmem:[%s231 + $0x20] sm:$0xf]
        %v465 = vld [vmem:[%s231 + $0x24] sm:$0x1]
        %v466 = vld [vmem:[%s231 + $0x28] sm:$0xf]
        %v467 = vld [vmem:[%s231 + $0x2c] sm:$0x1]
        %v468 = vld [vmem:[%s231 + $0x30] sm:$0xf]
        %v469 = vld [vmem:[%s231 + $0x34] sm:$0x1]
        %v470 = vld [vmem:[%s231 + $0x38] sm:$0xf]
        %v471 = vld [vmem:[%s231 + $0x3c] sm:$0x1]
        %vm472 = vsmask.f32 3328
        %vm473 = vsmask.f32 7440
        %vm474 = vmor %vm472, %vm473
        %v476 = vshrl.u32 %v456, 16
        %v478 = vrot.slane %v476, 4
        %v479 = vshll.u32 %v456, 16
        %v481 = vrot.slane %v479, 5
        %v482 = vor.u32 %v478, %v481
        %v483 = vrot.slane %v482, 4
        %v485 = vshll.u32 %v457, 16
        %v487 = vrot.slane %v485, 5
        %v488 = vsel %vm474, %v483, %v487
        %v490 = vshrl.u32 %v458, 16
        %v492 = vrot.slane %v490, 4
        %v493 = vshll.u32 %v458, 16
        %v495 = vrot.slane %v493, 5
        %v496 = vor.u32 %v492, %v495
        %v497 = vrot.slane %v496, 4
        %v499 = vshll.u32 %v459, 16
        %v501 = vrot.slane %v499, 5
        %v502 = vsel %vm474, %v497, %v501
        %v504 = vshrl.u32 %v460, 16
        %v506 = vrot.slane %v504, 4
        %v507 = vshll.u32 %v460, 16
        %v509 = vrot.slane %v507, 5
        %v510 = vor.u32 %v506, %v509
        %v511 = vrot.slane %v510, 4
        %v513 = vshll.u32 %v461, 16
        %v515 = vrot.slane %v513, 5
        %v516 = vsel %vm474, %v511, %v515
        %v518 = vshrl.u32 %v462, 16
        %v520 = vrot.slane %v518, 4
        %v521 = vshll.u32 %v462, 16
        %v523 = vrot.slane %v521, 5
        %v524 = vor.u32 %v520, %v523
        %v525 = vrot.slane %v524, 4
        %v527 = vshll.u32 %v463, 16
        %v529 = vrot.slane %v527, 5
        %v530 = vsel %vm474, %v525, %v529
        %v532 = vshrl.u32 %v464, 16
        %v534 = vrot.slane %v532, 4
        %v535 = vshll.u32 %v464, 16
        %v537 = vrot.slane %v535, 5
        %v538 = vor.u32 %v534, %v537
        %v539 = vrot.slane %v538, 4
        %v541 = vshll.u32 %v465, 16
        %v543 = vrot.slane %v541, 5
        %v544 = vsel %vm474, %v539, %v543
        %v546 = vshrl.u32 %v466, 16
        %v548 = vrot.slane %v546, 4
        %v549 = vshll.u32 %v466, 16
        %v551 = vrot.slane %v549, 5
        %v552 = vor.u32 %v548, %v551
        %v553 = vrot.slane %v552, 4
        %v555 = vshll.u32 %v467, 16
        %v557 = vrot.slane %v555, 5
        %v558 = vsel %vm474, %v553, %v557
        %v560 = vshrl.u32 %v468, 16
        %v562 = vrot.slane %v560, 4
        %v563 = vshll.u32 %v468, 16
        %v565 = vrot.slane %v563, 5
        %v566 = vor.u32 %v562, %v565
        %v567 = vrot.slane %v566, 4
        %v569 = vshll.u32 %v469, 16
        %v571 = vrot.slane %v569, 5
        %v572 = vsel %vm474, %v567, %v571
        %v574 = vshrl.u32 %v470, 16
        %v576 = vrot.slane %v574, 4
        %v577 = vshll.u32 %v470, 16
        %v579 = vrot.slane %v577, 5
        %v580 = vor.u32 %v576, %v579
        %v581 = vrot.slane %v580, 4
        %v583 = vshll.u32 %v471, 16
        %v585 = vrot.slane %v583, 5
        %v586 = vsel %vm474, %v581, %v585
        %s587 = scalar_lea.vmem %s1, 8
        %v588 = vld [vmem:[%s587] sm:$0xf]
        %v589 = vunpack.c.l.b16 %v488
        %v590 = vunpack.c.l.b16 %v502
        %v591 = vunpack.c.l.b16 %v516
        %v592 = vunpack.c.l.b16 %v530
        %v593 = vunpack.c.l.b16 %v544
        %v594 = vunpack.c.l.b16 %v558
        %v595 = vunpack.c.l.b16 %v572
        %v596 = vunpack.c.l.b16 %v586
        %v597 = vpack.c.b16 %v590, %v589
        %v598 = vpack.c.b16 %v592, %v591
        %v599 = vpack.c.b16 %v594, %v593
        %v600 = vpack.c.b16 %v596, %v595
        %v602 = vsel %vm274, %v597, 0
        %v605 = vsel %vm274, %v598, 0
        %v608 = vsel %vm274, %v599, 0
        %v611 = vsel %vm274, %v600, 0
        %v614 = vsel %vm287, %v588, 0
        %616 = vmatprep.subr.bf16.mxu0 0
        %617 = vmatpush1.bf16.msra.mxu0 %v614
        %618 = vmatprep.subr.bf16.mxu0 0
        %619 = vmatpush1.bf16.msra.mxu0 0
        %620 = vmatprep.subr.bf16.mxu0 0
        %621 = vmatpush1.bf16.msra.mxu0 0
        %622 = vmatprep.subr.bf16.mxu0 0
        %623 = vmatpush1.bf16.msra.mxu0 0
        %624 = vmatprep.subr.bf16.mxu0 0
        %625 = vmatpush1.bf16.msra.mxu0 0
        %626 = vmatprep.subr.bf16.mxu0 0
        %627 = vmatpush1.bf16.msra.mxu0 0
        %628 = vmatprep.subr.bf16.mxu0 0
        %629 = vmatpush1.bf16.msra.mxu0 0
        %630 = vmatprep.subr.bf16.mxu0 0
        %631 = vmatpush1.bf16.msra.mxu0 0
        %632 = vmatprep.subr.bf16.mxu0 0
        %633 = vmatpush1.bf16.msra.mxu0 0
        %634 = vmatprep.subr.bf16.mxu0 0
        %635 = vmatpush1.bf16.msra.mxu0 0
        %636 = vmatprep.subr.bf16.mxu0 0
        %637 = vmatpush1.bf16.msra.mxu0 0
        %638 = vmatprep.subr.bf16.mxu0 0
        %639 = vmatpush1.bf16.msra.mxu0 0
        %640 = vmatprep.subr.bf16.mxu0 0
        %641 = vmatpush1.bf16.msra.mxu0 0
        %642 = vmatprep.subr.bf16.mxu0 0
        %643 = vmatpush1.bf16.msra.mxu0 0
        %644 = vmatprep.subr.bf16.mxu0 0
        %645 = vmatpush1.bf16.msra.mxu0 0
        %646 = vmatprep.subr.bf16.mxu0 0
        %647 = vmatpush1.bf16.msra.mxu0 0
        %648 = vmatprep.mubr.bf16.mxu0 0
        %649 = vmatmul.mubr.bf16.gmra.mrb[0].mxu0 %v602
        %v650 = vpop.f32.mrb[0].mxu0
        %v651 = vadd.f32 0.0, %v650
        %v652 = vpop.f32.mrb[0].mxu0
        %v653 = vpop.f32.mrb[0].mxu0
        %v654 = vadd.f32 0.0, %v653
        %v655 = vpop.f32.mrb[0].mxu0
        %656 = vmatprep.mubr.bf16.mxu0 0
        %657 = vmatmul.mubr.bf16.gmra.mrb[0].mxu0 %v605
        %v658 = vpop.f32.mrb[0].mxu0
        %v659 = vadd.f32 0.0, %v658
        %v660 = vpop.f32.mrb[0].mxu0
        %v661 = vpop.f32.mrb[0].mxu0
        %v662 = vadd.f32 0.0, %v661
        %v663 = vpop.f32.mrb[0].mxu0
        %664 = vmatprep.mubr.bf16.mxu0 0
        %665 = vmatmul.mubr.bf16.gmra.mrb[0].mxu0 %v608
        %v666 = vpop.f32.mrb[0].mxu0
        %v667 = vadd.f32 0.0, %v666
        %v668 = vpop.f32.mrb[0].mxu0
        %v669 = vpop.f32.mrb[0].mxu0
        %v670 = vadd.f32 0.0, %v669
        %v671 = vpop.f32.mrb[0].mxu0
        %672 = vmatprep.mubr.bf16.mxu0 0
        %673 = vmatmul.mubr.bf16.gmra.mrb[0].mxu0 %v611
        %v674 = vpop.f32.mrb[0].mxu0
        %v675 = vadd.f32 0.0, %v674
        %v676 = vpop.f32.mrb[0].mxu0
        %v677 = vpop.f32.mrb[0].mxu0
        %v678 = vadd.f32 0.0, %v677
        %v679 = vpop.f32.mrb[0].mxu0
        %680 = vdwg.mxu0
        %v681 = vadd.f32 %v426, %v651
        %v682 = vadd.f32 %v429, %v654
        %v683 = vadd.f32 %v434, %v659
        %v684 = vadd.f32 %v437, %v662
        %v685 = vadd.f32 %v442, %v667
        %v686 = vadd.f32 %v445, %v670
        %v687 = vadd.f32 %v450, %v675
        %v688 = vadd.f32 %v453, %v678
        %s689 = sadd.s32 %s229, 36
        %s690 = smul.addr %s689, 4
        %s691 = scalar_lea.vmem %s225, %s690
        %v692 = vld [vmem:[%s691] sm:$0xf]
        %v693 = vld [vmem:[%s691 + $0x8] sm:$0xf]
        %v694 = vld [vmem:[%s691 + $0x10] sm:$0xf]
        %v695 = vld [vmem:[%s691 + $0x18] sm:$0xf]
        %v696 = vld [vmem:[%s691 + $0x20] sm:$0xf]
        %v697 = vld [vmem:[%s691 + $0x28] sm:$0xf]
        %v698 = vld [vmem:[%s691 + $0x30] sm:$0xf]
        %v699 = vld [vmem:[%s691 + $0x38] sm:$0xf]
        %s700 = scalar_lea.vmem %s1, 12
        %v701 = vld [vmem:[%s700] sm:$0xf]
        %v710 = vunpack.c.l.b16 %v692
        %v711 = vunpack.c.l.b16 %v693
        %v712 = vunpack.c.l.b16 %v694
        %v713 = vunpack.c.l.b16 %v695
        %v714 = vunpack.c.l.b16 %v696
        %v715 = vunpack.c.l.b16 %v697
        %v716 = vunpack.c.l.b16 %v698
        %v717 = vunpack.c.l.b16 %v699
        %v718 = vpack.c.b16 %v711, %v710
        %v719 = vpack.c.b16 %v713, %v712
        %v720 = vpack.c.b16 %v715, %v714
        %v721 = vpack.c.b16 %v717, %v716
        %v723 = vsel %vm274, %v718, 0
        %v726 = vsel %vm274, %v719, 0
        %v729 = vsel %vm274, %v720, 0
        %v732 = vsel %vm274, %v721, 0
        %v735 = vsel %vm287, %v701, 0
        %737 = vmatprep.subr.bf16.mxu0 0
        %738 = vmatpush1.bf16.msra.mxu0 %v735
        %739 = vmatprep.subr.bf16.mxu0 0
        %740 = vmatpush1.bf16.msra.mxu0 0
        %741 = vmatprep.subr.bf16.mxu0 0
        %742 = vmatpush1.bf16.msra.mxu0 0
        %743 = vmatprep.subr.bf16.mxu0 0
        %744 = vmatpush1.bf16.msra.mxu0 0
        %745 = vmatprep.subr.bf16.mxu0 0
        %746 = vmatpush1.bf16.msra.mxu0 0
        %747 = vmatprep.subr.bf16.mxu0 0
        %748 = vmatpush1.bf16.msra.mxu0 0
        %749 = vmatprep.subr.bf16.mxu0 0
        %750 = vmatpush1.bf16.msra.mxu0 0
        %751 = vmatprep.subr.bf16.mxu0 0
        %752 = vmatpush1.bf16.msra.mxu0 0
        %753 = vmatprep.subr.bf16.mxu0 0
        %754 = vmatpush1.bf16.msra.mxu0 0
        %755 = vmatprep.subr.bf16.mxu0 0
        %756 = vmatpush1.bf16.msra.mxu0 0
        %757 = vmatprep.subr.bf16.mxu0 0
        %758 = vmatpush1.bf16.msra.mxu0 0
        %759 = vmatprep.subr.bf16.mxu0 0
        %760 = vmatpush1.bf16.msra.mxu0 0
        %761 = vmatprep.subr.bf16.mxu0 0
        %762 = vmatpush1.bf16.msra.mxu0 0
        %763 = vmatprep.subr.bf16.mxu0 0
        %764 = vmatpush1.bf16.msra.mxu0 0
        %765 = vmatprep.subr.bf16.mxu0 0
        %766 = vmatpush1.bf16.msra.mxu0 0
        %767 = vmatprep.subr.bf16.mxu0 0
        %768 = vmatpush1.bf16.msra.mxu0 0
        %769 = vmatprep.mubr.bf16.mxu0 0
        %770 = vmatmul.mubr.bf16.gmra.mrb[0].mxu0 %v723
        %v771 = vpop.f32.mrb[0].mxu0
        %v772 = vadd.f32 0.0, %v771
        %v773 = vpop.f32.mrb[0].mxu0
        %v774 = vpop.f32.mrb[0].mxu0
        %v775 = vadd.f32 0.0, %v774
        %v776 = vpop.f32.mrb[0].mxu0
        %777 = vmatprep.mubr.bf16.mxu0 0
        %778 = vmatmul.mubr.bf16.gmra.mrb[0].mxu0 %v726
        %v779 = vpop.f32.mrb[0].mxu0
        %v780 = vadd.f32 0.0, %v779
        %v781 = vpop.f32.mrb[0].mxu0
        %v782 = vpop.f32.mrb[0].mxu0
        %v783 = vadd.f32 0.0, %v782
        %v784 = vpop.f32.mrb[0].mxu0
        %785 = vmatprep.mubr.bf16.mxu0 0
        %786 = vmatmul.mubr.bf16.gmra.mrb[0].mxu0 %v729
        %v787 = vpop.f32.mrb[0].mxu0
        %v788 = vadd.f32 0.0, %v787
        %v789 = vpop.f32.mrb[0].mxu0
        %v790 = vpop.f32.mrb[0].mxu0
        %v791 = vadd.f32 0.0, %v790
        %v792 = vpop.f32.mrb[0].mxu0
        %793 = vmatprep.mubr.bf16.mxu0 0
        %794 = vmatmul.mubr.bf16.gmra.mrb[0].mxu0 %v732
        %v795 = vpop.f32.mrb[0].mxu0
        %v796 = vadd.f32 0.0, %v795
        %v797 = vpop.f32.mrb[0].mxu0
        %v798 = vpop.f32.mrb[0].mxu0
        %v799 = vadd.f32 0.0, %v798
        %v800 = vpop.f32.mrb[0].mxu0
        %801 = vdwg.mxu0
        %v802 = vadd.f32 %v681, %v772
        %v803 = vadd.f32 %v682, %v775
        %v804 = vadd.f32 %v683, %v780
        %v805 = vadd.f32 %v684, %v783
        %v806 = vadd.f32 %v685, %v788
        %v807 = vadd.f32 %v686, %v791
        %v808 = vadd.f32 %v687, %v796
        %v809 = vadd.f32 %v688, %v799
        %s810 = sadd.s32 %s229, 54
        %s811 = smul.addr %s810, 4
        %s812 = scalar_lea.vmem %s225, %s811
        %v813 = vld [vmem:[%s812] sm:$0xf]
        %v814 = vld [vmem:[%s812 + $0x8] sm:$0xf]
        %v815 = vld [vmem:[%s812 + $0x10] sm:$0xf]
        %v816 = vld [vmem:[%s812 + $0x18] sm:$0xf]
        %v817 = vld [vmem:[%s812 + $0x20] sm:$0xf]
        %v818 = vld [vmem:[%s812 + $0x28] sm:$0xf]
        %v819 = vld [vmem:[%s812 + $0x30] sm:$0xf]
        %v820 = vld [vmem:[%s812 + $0x38] sm:$0xf]
        %s821 = scalar_lea.vmem %s1, 16
        %v822 = vld [vmem:[%s821] sm:$0xf]
        %v831 = vunpack.c.l.b16 %v813
        %v832 = vunpack.c.l.b16 %v814
        %v833 = vunpack.c.l.b16 %v815
        %v834 = vunpack.c.l.b16 %v816
        %v835 = vunpack.c.l.b16 %v817
        %v836 = vunpack.c.l.b16 %v818
        %v837 = vunpack.c.l.b16 %v819
        %v838 = vunpack.c.l.b16 %v820
        %v839 = vpack.c.b16 %v832, %v831
        %v840 = vpack.c.b16 %v834, %v833
        %v841 = vpack.c.b16 %v836, %v835
        %v842 = vpack.c.b16 %v838, %v837
        %v844 = vsel %vm274, %v839, 0
        %v847 = vsel %vm274, %v840, 0
        %v850 = vsel %vm274, %v841, 0
        %v853 = vsel %vm274, %v842, 0
        %v856 = vsel %vm287, %v822, 0
        %858 = vmatprep.subr.bf16.mxu0 0
        %859 = vmatpush1.bf16.msra.mxu0 %v856
        %860 = vmatprep.subr.bf16.mxu0 0
        %861 = vmatpush1.bf16.msra.mxu0 0
        %862 = vmatprep.subr.bf16.mxu0 0
        %863 = vmatpush1.bf16.msra.mxu0 0
        %864 = vmatprep.subr.bf16.mxu0 0
        %865 = vmatpush1.bf16.msra.mxu0 0
        %866 = vmatprep.subr.bf16.mxu0 0
        %867 = vmatpush1.bf16.msra.mxu0 0
        %868 = vmatprep.subr.bf16.mxu0 0
        %869 = vmatpush1.bf16.msra.mxu0 0
        %870 = vmatprep.subr.bf16.mxu0 0
        %871 = vmatpush1.bf16.msra.mxu0 0
        %872 = vmatprep.subr.bf16.mxu0 0
        %873 = vmatpush1.bf16.msra.mxu0 0
        %874 = vmatprep.subr.bf16.mxu0 0
        %875 = vmatpush1.bf16.msra.mxu0 0
        %876 = vmatprep.subr.bf16.mxu0 0
        %877 = vmatpush1.bf16.msra.mxu0 0
        %878 = vmatprep.subr.bf16.mxu0 0
        %879 = vmatpush1.bf16.msra.mxu0 0
        %880 = vmatprep.subr.bf16.mxu0 0
        %881 = vmatpush1.bf16.msra.mxu0 0
        %882 = vmatprep.subr.bf16.mxu0 0
        %883 = vmatpush1.bf16.msra.mxu0 0
        %884 = vmatprep.subr.bf16.mxu0 0
        %885 = vmatpush1.bf16.msra.mxu0 0
        %886 = vmatprep.subr.bf16.mxu0 0
        %887 = vmatpush1.bf16.msra.mxu0 0
        %888 = vmatprep.subr.bf16.mxu0 0
        %889 = vmatpush1.bf16.msra.mxu0 0
        %890 = vmatprep.mubr.bf16.mxu0 0
        %891 = vmatmul.mubr.bf16.gmra.mrb[0].mxu0 %v844
        %v892 = vpop.f32.mrb[0].mxu0
        %v893 = vadd.f32 0.0, %v892
        %v894 = vpop.f32.mrb[0].mxu0
        %v895 = vpop.f32.mrb[0].mxu0
        %v896 = vadd.f32 0.0, %v895
        %v897 = vpop.f32.mrb[0].mxu0
        %898 = vmatprep.mubr.bf16.mxu0 0
        %899 = vmatmul.mubr.bf16.gmra.mrb[0].mxu0 %v847
        %v900 = vpop.f32.mrb[0].mxu0
        %v901 = vadd.f32 0.0, %v900
        %v902 = vpop.f32.mrb[0].mxu0
        %v903 = vpop.f32.mrb[0].mxu0
        %v904 = vadd.f32 0.0, %v903
        %v905 = vpop.f32.mrb[0].mxu0
        %906 = vmatprep.mubr.bf16.mxu0 0
        %907 = vmatmul.mubr.bf16.gmra.mrb[0].mxu0 %v850
        %v908 = vpop.f32.mrb[0].mxu0
        %v909 = vadd.f32 0.0, %v908
        %v910 = vpop.f32.mrb[0].mxu0
        %v911 = vpop.f32.mrb[0].mxu0
        %v912 = vadd.f32 0.0, %v911
        %v913 = vpop.f32.mrb[0].mxu0
        %914 = vmatprep.mubr.bf16.mxu0 0
        %915 = vmatmul.mubr.bf16.gmra.mrb[0].mxu0 %v853
        %v916 = vpop.f32.mrb[0].mxu0
        %v917 = vadd.f32 0.0, %v916
        %v918 = vpop.f32.mrb[0].mxu0
        %v919 = vpop.f32.mrb[0].mxu0
        %v920 = vadd.f32 0.0, %v919
        %v921 = vpop.f32.mrb[0].mxu0
        %922 = vdwg.mxu0
        %v923 = vadd.f32 %v802, %v893
        %v924 = vadd.f32 %v803, %v896
        %v925 = vadd.f32 %v804, %v901
        %v926 = vadd.f32 %v805, %v904
        %v927 = vadd.f32 %v806, %v909
        %v928 = vadd.f32 %v807, %v912
        %v929 = vadd.f32 %v808, %v917
        %v930 = vadd.f32 %v809, %v920
        %v931 = vld [vmem:[%s691] sm:$0xf]
        %v932 = vld [vmem:[%s691 + $0x4] sm:$0x1]
        %v933 = vld [vmem:[%s691 + $0x8] sm:$0xf]
        %v934 = vld [vmem:[%s691 + $0xc] sm:$0x1]
        %v935 = vld [vmem:[%s691 + $0x10] sm:$0xf]
        %v936 = vld [vmem:[%s691 + $0x14] sm:$0x1]
        %v937 = vld [vmem:[%s691 + $0x18] sm:$0xf]
        %v938 = vld [vmem:[%s691 + $0x1c] sm:$0x1]
        %v939 = vld [vmem:[%s691 + $0x20] sm:$0xf]
        %v940 = vld [vmem:[%s691 + $0x24] sm:$0x1]
        %v941 = vld [vmem:[%s691 + $0x28] sm:$0xf]
        %v942 = vld [vmem:[%s691 + $0x2c] sm:$0x1]
        %v943 = vld [vmem:[%s691 + $0x30] sm:$0xf]
        %v944 = vld [vmem:[%s691 + $0x34] sm:$0x1]
        %v945 = vld [vmem:[%s691 + $0x38] sm:$0xf]
        %v946 = vld [vmem:[%s691 + $0x3c] sm:$0x1]
        %v948 = vshrl.u32 %v931, 16
        %v950 = vrot.slane %v948, 4
        %v951 = vshll.u32 %v931, 16
        %v953 = vrot.slane %v951, 5
        %v954 = vor.u32 %v950, %v953
        %v955 = vrot.slane %v954, 4
        %v957 = vshll.u32 %v932, 16
        %v959 = vrot.slane %v957, 5
        %v960 = vsel %vm474, %v955, %v959
        %v962 = vshrl.u32 %v933, 16
        %v964 = vrot.slane %v962, 4
        %v965 = vshll.u32 %v933, 16
        %v967 = vrot.slane %v965, 5
        %v968 = vor.u32 %v964, %v967
        %v969 = vrot.slane %v968, 4
        %v971 = vshll.u32 %v934, 16
        %v973 = vrot.slane %v971, 5
        %v974 = vsel %vm474, %v969, %v973
        %v976 = vshrl.u32 %v935, 16
        %v978 = vrot.slane %v976, 4
        %v979 = vshll.u32 %v935, 16
        %v981 = vrot.slane %v979, 5
        %v982 = vor.u32 %v978, %v981
        %v983 = vrot.slane %v982, 4
        %v985 = vshll.u32 %v936, 16
        %v987 = vrot.slane %v985, 5
        %v988 = vsel %vm474, %v983, %v987
        %v990 = vshrl.u32 %v937, 16
        %v992 = vrot.slane %v990, 4
        %v993 = vshll.u32 %v937, 16
        %v995 = vrot.slane %v993, 5
        %v996 = vor.u32 %v992, %v995
        %v997 = vrot.slane %v996, 4
        %v999 = vshll.u32 %v938, 16
        %v1001 = vrot.slane %v999, 5
        %v1002 = vsel %vm474, %v997, %v1001
        %v1004 = vshrl.u32 %v939, 16
        %v1006 = vrot.slane %v1004, 4
        %v1007 = vshll.u32 %v939, 16
        %v1009 = vrot.slane %v1007, 5
        %v1010 = vor.u32 %v1006, %v1009
        %v1011 = vrot.slane %v1010, 4
        %v1013 = vshll.u32 %v940, 16
        %v1015 = vrot.slane %v1013, 5
        %v1016 = vsel %vm474, %v1011, %v1015
        %v1018 = vshrl.u32 %v941, 16
        %v1020 = vrot.slane %v1018, 4
        %v1021 = vshll.u32 %v941, 16
        %v1023 = vrot.slane %v1021, 5
        %v1024 = vor.u32 %v1020, %v1023
        %v1025 = vrot.slane %v1024, 4
        %v1027 = vshll.u32 %v942, 16
        %v1029 = vrot.slane %v1027, 5
        %v1030 = vsel %vm474, %v1025, %v1029
        %v1032 = vshrl.u32 %v943, 16
        %v1034 = vrot.slane %v1032, 4
        %v1035 = vshll.u32 %v943, 16
        %v1037 = vrot.slane %v1035, 5
        %v1038 = vor.u32 %v1034, %v1037
        %v1039 = vrot.slane %v1038, 4
        %v1041 = vshll.u32 %v944, 16
        %v1043 = vrot.slane %v1041, 5
        %v1044 = vsel %vm474, %v1039, %v1043
        %v1046 = vshrl.u32 %v945, 16
        %v1048 = vrot.slane %v1046, 4
        %v1049 = vshll.u32 %v945, 16
        %v1051 = vrot.slane %v1049, 5
        %v1052 = vor.u32 %v1048, %v1051
        %v1053 = vrot.slane %v1052, 4
        %v1055 = vshll.u32 %v946, 16
        %v1057 = vrot.slane %v1055, 5
        %v1058 = vsel %vm474, %v1053, %v1057
        %s1059 = scalar_lea.vmem %s1, 20
        %v1060 = vld [vmem:[%s1059] sm:$0xf]
        %v1061 = vunpack.c.l.b16 %v960
        %v1062 = vunpack.c.l.b16 %v974
        %v1063 = vunpack.c.l.b16 %v988
        %v1064 = vunpack.c.l.b16 %v1002
        %v1065 = vunpack.c.l.b16 %v1016
        %v1066 = vunpack.c.l.b16 %v1030
        %v1067 = vunpack.c.l.b16 %v1044
        %v1068 = vunpack.c.l.b16 %v1058
        %v1069 = vpack.c.b16 %v1062, %v1061
        %v1070 = vpack.c.b16 %v1064, %v1063
        %v1071 = vpack.c.b16 %v1066, %v1065
        %v1072 = vpack.c.b16 %v1068, %v1067
        %v1074 = vsel %vm274, %v1069, 0
        %v1077 = vsel %vm274, %v1070, 0
        %v1080 = vsel %vm274, %v1071, 0
        %v1083 = vsel %vm274, %v1072, 0
        %v1086 = vsel %vm287, %v1060, 0
        %1088 = vmatprep.subr.bf16.mxu0 0
        %1089 = vmatpush1.bf16.msra.mxu0 %v1086
        %1090 = vmatprep.subr.bf16.mxu0 0
        %1091 = vmatpush1.bf16.msra.mxu0 0
        %1092 = vmatprep.subr.bf16.mxu0 0
        %1093 = vmatpush1.bf16.msra.mxu0 0
        %1094 = vmatprep.subr.bf16.mxu0 0
        %1095 = vmatpush1.bf16.msra.mxu0 0
        %1096 = vmatprep.subr.bf16.mxu0 0
        %1097 = vmatpush1.bf16.msra.mxu0 0
        %1098 = vmatprep.subr.bf16.mxu0 0
        %1099 = vmatpush1.bf16.msra.mxu0 0
        %1100 = vmatprep.subr.bf16.mxu0 0
        %1101 = vmatpush1.bf16.msra.mxu0 0
        %1102 = vmatprep.subr.bf16.mxu0 0
        %1103 = vmatpush1.bf16.msra.mxu0 0
        %1104 = vmatprep.subr.bf16.mxu0 0
        %1105 = vmatpush1.bf16.msra.mxu0 0
        %1106 = vmatprep.subr.bf16.mxu0 0
        %1107 = vmatpush1.bf16.msra.mxu0 0
        %1108 = vmatprep.subr.bf16.mxu0 0
        %1109 = vmatpush1.bf16.msra.mxu0 0
        %1110 = vmatprep.subr.bf16.mxu0 0
        %1111 = vmatpush1.bf16.msra.mxu0 0
        %1112 = vmatprep.subr.bf16.mxu0 0
        %1113 = vmatpush1.bf16.msra.mxu0 0
        %1114 = vmatprep.subr.bf16.mxu0 0
        %1115 = vmatpush1.bf16.msra.mxu0 0
        %1116 = vmatprep.subr.bf16.mxu0 0
        %1117 = vmatpush1.bf16.msra.mxu0 0
        %1118 = vmatprep.subr.bf16.mxu0 0
        %1119 = vmatpush1.bf16.msra.mxu0 0
        %1120 = vmatprep.mubr.bf16.mxu0 0
        %1121 = vmatmul.mubr.bf16.gmra.mrb[0].mxu0 %v1074
        %v1122 = vpop.f32.mrb[0].mxu0
        %v1123 = vadd.f32 0.0, %v1122
        %v1124 = vpop.f32.mrb[0].mxu0
        %v1125 = vpop.f32.mrb[0].mxu0
        %v1126 = vadd.f32 0.0, %v1125
        %v1127 = vpop.f32.mrb[0].mxu0
        %1128 = vmatprep.mubr.bf16.mxu0 0
        %1129 = vmatmul.mubr.bf16.gmra.mrb[0].mxu0 %v1077
        %v1130 = vpop.f32.mrb[0].mxu0
        %v1131 = vadd.f32 0.0, %v1130
        %v1132 = vpop.f32.mrb[0].mxu0
        %v1133 = vpop.f32.mrb[0].mxu0
        %v1134 = vadd.f32 0.0, %v1133
        %v1135 = vpop.f32.mrb[0].mxu0
        %1136 = vmatprep.mubr.bf16.mxu0 0
        %1137 = vmatmul.mubr.bf16.gmra.mrb[0].mxu0 %v1080
        %v1138 = vpop.f32.mrb[0].mxu0
        %v1139 = vadd.f32 0.0, %v1138
        %v1140 = vpop.f32.mrb[0].mxu0
        %v1141 = vpop.f32.mrb[0].mxu0
        %v1142 = vadd.f32 0.0, %v1141
        %v1143 = vpop.f32.mrb[0].mxu0
        %1144 = vmatprep.mubr.bf16.mxu0 0
        %1145 = vmatmul.mubr.bf16.gmra.mrb[0].mxu0 %v1083
        %v1146 = vpop.f32.mrb[0].mxu0
        %v1147 = vadd.f32 0.0, %v1146
        %v1148 = vpop.f32.mrb[0].mxu0
        %v1149 = vpop.f32.mrb[0].mxu0
        %v1150 = vadd.f32 0.0, %v1149
        %v1151 = vpop.f32.mrb[0].mxu0
        %1152 = vdwg.mxu0
        %v1153 = vadd.f32 %v923, %v1123
        %v1154 = vadd.f32 %v924, %v1126
        %v1155 = vadd.f32 %v925, %v1131
        %v1156 = vadd.f32 %v926, %v1134
        %v1157 = vadd.f32 %v927, %v1139
        %v1158 = vadd.f32 %v928, %v1142
        %v1159 = vadd.f32 %v929, %v1147
        %v1160 = vadd.f32 %v930, %v1150
        %s1161 = sadd.s32 %s228, 1
        %s1162 = smul.u32 %s1161, 2
        %s1163 = smul.addr %s1162, 4
        %s1164 = scalar_lea.vmem %s225, %s1163
        %v1165 = vld [vmem:[%s1164] sm:$0xf]
        %v1166 = vld [vmem:[%s1164 + $0x8] sm:$0xf]
        %v1167 = vld [vmem:[%s1164 + $0x10] sm:$0xf]
        %v1168 = vld [vmem:[%s1164 + $0x18] sm:$0xf]
        %v1169 = vld [vmem:[%s1164 + $0x20] sm:$0xf]
        %v1170 = vld [vmem:[%s1164 + $0x28] sm:$0xf]
        %v1171 = vld [vmem:[%s1164 + $0x30] sm:$0xf]
        %v1172 = vld [vmem:[%s1164 + $0x38] sm:$0xf]
        %s1173 = scalar_lea.vmem %s1, 24
        %v1174 = vld [vmem:[%s1173] sm:$0xf]
        %v1183 = vunpack.c.l.b16 %v1165
        %v1184 = vunpack.c.l.b16 %v1166
        %v1185 = vunpack.c.l.b16 %v1167
        %v1186 = vunpack.c.l.b16 %v1168
        %v1187 = vunpack.c.l.b16 %v1169
        %v1188 = vunpack.c.l.b16 %v1170
        %v1189 = vunpack.c.l.b16 %v1171
        %v1190 = vunpack.c.l.b16 %v1172
        %v1191 = vpack.c.b16 %v1184, %v1183
        %v1192 = vpack.c.b16 %v1186, %v1185
        %v1193 = vpack.c.b16 %v1188, %v1187
        %v1194 = vpack.c.b16 %v1190, %v1189
        %v1196 = vsel %vm274, %v1191, 0
        %v1199 = vsel %vm274, %v1192, 0
        %v1202 = vsel %vm274, %v1193, 0
        %v1205 = vsel %vm274, %v1194, 0
        %v1208 = vsel %vm287, %v1174, 0
        %1210 = vmatprep.subr.bf16.mxu0 0
        %1211 = vmatpush1.bf16.msra.mxu0 %v1208
        %1212 = vmatprep.subr.bf16.mxu0 0
        %1213 = vmatpush1.bf16.msra.mxu0 0
        %1214 = vmatprep.subr.bf16.mxu0 0
        %1215 = vmatpush1.bf16.msra.mxu0 0
        %1216 = vmatprep.subr.bf16.mxu0 0
        %1217 = vmatpush1.bf16.msra.mxu0 0
        %1218 = vmatprep.subr.bf16.mxu0 0
        %1219 = vmatpush1.bf16.msra.mxu0 0
        %1220 = vmatprep.subr.bf16.mxu0 0
        %1221 = vmatpush1.bf16.msra.mxu0 0
        %1222 = vmatprep.subr.bf16.mxu0 0
        %1223 = vmatpush1.bf16.msra.mxu0 0
        %1224 = vmatprep.subr.bf16.mxu0 0
        %1225 = vmatpush1.bf16.msra.mxu0 0
        %1226 = vmatprep.subr.bf16.mxu0 0
        %1227 = vmatpush1.bf16.msra.mxu0 0
        %1228 = vmatprep.subr.bf16.mxu0 0
        %1229 = vmatpush1.bf16.msra.mxu0 0
        %1230 = vmatprep.subr.bf16.mxu0 0
        %1231 = vmatpush1.bf16.msra.mxu0 0
        %1232 = vmatprep.subr.bf16.mxu0 0
        %1233 = vmatpush1.bf16.msra.mxu0 0
        %1234 = vmatprep.subr.bf16.mxu0 0
        %1235 = vmatpush1.bf16.msra.mxu0 0
        %1236 = vmatprep.subr.bf16.mxu0 0
        %1237 = vmatpush1.bf16.msra.mxu0 0
        %1238 = vmatprep.subr.bf16.mxu0 0
        %1239 = vmatpush1.bf16.msra.mxu0 0
        %1240 = vmatprep.subr.bf16.mxu0 0
        %1241 = vmatpush1.bf16.msra.mxu0 0
        %1242 = vmatprep.mubr.bf16.mxu0 0
        %1243 = vmatmul.mubr.bf16.gmra.mrb[0].mxu0 %v1196
        %v1244 = vpop.f32.mrb[0].mxu0
        %v1245 = vadd.f32 0.0, %v1244
        %v1246 = vpop.f32.mrb[0].mxu0
        %v1247 = vpop.f32.mrb[0].mxu0
        %v1248 = vadd.f32 0.0, %v1247
        %v1249 = vpop.f32.mrb[0].mxu0
        %1250 = vmatprep.mubr.bf16.mxu0 0
        %1251 = vmatmul.mubr.bf16.gmra.mrb[0].mxu0 %v1199
        %v1252 = vpop.f32.mrb[0].mxu0
        %v1253 = vadd.f32 0.0, %v1252
        %v1254 = vpop.f32.mrb[0].mxu0
        %v1255 = vpop.f32.mrb[0].mxu0
        %v1256 = vadd.f32 0.0, %v1255
        %v1257 = vpop.f32.mrb[0].mxu0
        %1258 = vmatprep.mubr.bf16.mxu0 0
        %1259 = vmatmul.mubr.bf16.gmra.mrb[0].mxu0 %v1202
        %v1260 = vpop.f32.mrb[0].mxu0
        %v1261 = vadd.f32 0.0, %v1260
        %v1262 = vpop.f32.mrb[0].mxu0
        %v1263 = vpop.f32.mrb[0].mxu0
        %v1264 = vadd.f32 0.0, %v1263
        %v1265 = vpop.f32.mrb[0].mxu0
        %1266 = vmatprep.mubr.bf16.mxu0 0
        %1267 = vmatmul.mubr.bf16.gmra.mrb[0].mxu0 %v1205
        %v1268 = vpop.f32.mrb[0].mxu0
        %v1269 = vadd.f32 0.0, %v1268
        %v1270 = vpop.f32.mrb[0].mxu0
        %v1271 = vpop.f32.mrb[0].mxu0
        %v1272 = vadd.f32 0.0, %v1271
        %v1273 = vpop.f32.mrb[0].mxu0
        %1274 = vdwg.mxu0
        %v1275 = vadd.f32 %v1153, %v1245
        %v1276 = vadd.f32 %v1154, %v1248
        %v1277 = vadd.f32 %v1155, %v1253
        %v1278 = vadd.f32 %v1156, %v1256
        %v1279 = vadd.f32 %v1157, %v1261
        %v1280 = vadd.f32 %v1158, %v1264
        %v1281 = vadd.f32 %v1159, %v1269
        %v1282 = vadd.f32 %v1160, %v1272
        %s1283 = sadd.s32 %s1162, 18
        %s1284 = smul.addr %s1283, 4
        %s1285 = scalar_lea.vmem %s225, %s1284
        %v1286 = vld [vmem:[%s1285] sm:$0xf]
        %v1287 = vld [vmem:[%s1285 + $0x8] sm:$0xf]
        %v1288 = vld [vmem:[%s1285 + $0x10] sm:$0xf]
        %v1289 = vld [vmem:[%s1285 + $0x18] sm:$0xf]
        %v1290 = vld [vmem:[%s1285 + $0x20] sm:$0xf]
        %v1291 = vld [vmem:[%s1285 + $0x28] sm:$0xf]
        %v1292 = vld [vmem:[%s1285 + $0x30] sm:$0xf]
        %v1293 = vld [vmem:[%s1285 + $0x38] sm:$0xf]
        %s1294 = scalar_lea.vmem %s1, 28
        %v1295 = vld [vmem:[%s1294] sm:$0xf]
        %v1304 = vunpack.c.l.b16 %v1286
        %v1305 = vunpack.c.l.b16 %v1287
        %v1306 = vunpack.c.l.b16 %v1288
        %v1307 = vunpack.c.l.b16 %v1289
        %v1308 = vunpack.c.l.b16 %v1290
        %v1309 = vunpack.c.l.b16 %v1291
        %v1310 = vunpack.c.l.b16 %v1292
        %v1311 = vunpack.c.l.b16 %v1293
        %v1312 = vpack.c.b16 %v1305, %v1304
        %v1313 = vpack.c.b16 %v1307, %v1306
        %v1314 = vpack.c.b16 %v1309, %v1308
        %v1315 = vpack.c.b16 %v1311, %v1310
        %v1317 = vsel %vm274, %v1312, 0
        %v1320 = vsel %vm274, %v1313, 0
        %v1323 = vsel %vm274, %v1314, 0
        %v1326 = vsel %vm274, %v1315, 0
        %v1329 = vsel %vm287, %v1295, 0
        %1331 = vmatprep.subr.bf16.mxu0 0
        %1332 = vmatpush1.bf16.msra.mxu0 %v1329
        %1333 = vmatprep.subr.bf16.mxu0 0
        %1334 = vmatpush1.bf16.msra.mxu0 0
        %1335 = vmatprep.subr.bf16.mxu0 0
        %1336 = vmatpush1.bf16.msra.mxu0 0
        %1337 = vmatprep.subr.bf16.mxu0 0
        %1338 = vmatpush1.bf16.msra.mxu0 0
        %1339 = vmatprep.subr.bf16.mxu0 0
        %1340 = vmatpush1.bf16.msra.mxu0 0
        %1341 = vmatprep.subr.bf16.mxu0 0
        %1342 = vmatpush1.bf16.msra.mxu0 0
        %1343 = vmatprep.subr.bf16.mxu0 0
        %1344 = vmatpush1.bf16.msra.mxu0 0
        %1345 = vmatprep.subr.bf16.mxu0 0
        %1346 = vmatpush1.bf16.msra.mxu0 0
        %1347 = vmatprep.subr.bf16.mxu0 0
        %1348 = vmatpush1.bf16.msra.mxu0 0
        %1349 = vmatprep.subr.bf16.mxu0 0
        %1350 = vmatpush1.bf16.msra.mxu0 0
        %1351 = vmatprep.subr.bf16.mxu0 0
        %1352 = vmatpush1.bf16.msra.mxu0 0
        %1353 = vmatprep.subr.bf16.mxu0 0
        %1354 = vmatpush1.bf16.msra.mxu0 0
        %1355 = vmatprep.subr.bf16.mxu0 0
        %1356 = vmatpush1.bf16.msra.mxu0 0
        %1357 = vmatprep.subr.bf16.mxu0 0
        %1358 = vmatpush1.bf16.msra.mxu0 0
        %1359 = vmatprep.subr.bf16.mxu0 0
        %1360 = vmatpush1.bf16.msra.mxu0 0
        %1361 = vmatprep.subr.bf16.mxu0 0
        %1362 = vmatpush1.bf16.msra.mxu0 0
        %1363 = vmatprep.mubr.bf16.mxu0 0
        %1364 = vmatmul.mubr.bf16.gmra.mrb[0].mxu0 %v1317
        %v1365 = vpop.f32.mrb[0].mxu0
        %v1366 = vadd.f32 0.0, %v1365
        %v1367 = vpop.f32.mrb[0].mxu0
        %v1368 = vpop.f32.mrb[0].mxu0
        %v1369 = vadd.f32 0.0, %v1368
        %v1370 = vpop.f32.mrb[0].mxu0
        %1371 = vmatprep.mubr.bf16.mxu0 0
        %1372 = vmatmul.mubr.bf16.gmra.mrb[0].mxu0 %v1320
        %v1373 = vpop.f32.mrb[0].mxu0
        %v1374 = vadd.f32 0.0, %v1373
        %v1375 = vpop.f32.mrb[0].mxu0
        %v1376 = vpop.f32.mrb[0].mxu0
        %v1377 = vadd.f32 0.0, %v1376
        %v1378 = vpop.f32.mrb[0].mxu0
        %1379 = vmatprep.mubr.bf16.mxu0 0
        %1380 = vmatmul.mubr.bf16.gmra.mrb[0].mxu0 %v1323
        %v1381 = vpop.f32.mrb[0].mxu0
        %v1382 = vadd.f32 0.0, %v1381
        %v1383 = vpop.f32.mrb[0].mxu0
        %v1384 = vpop.f32.mrb[0].mxu0
        %v1385 = vadd.f32 0.0, %v1384
        %v1386 = vpop.f32.mrb[0].mxu0
        %1387 = vmatprep.mubr.bf16.mxu0 0
        %1388 = vmatmul.mubr.bf16.gmra.mrb[0].mxu0 %v1326
        %v1389 = vpop.f32.mrb[0].mxu0
        %v1390 = vadd.f32 0.0, %v1389
        %v1391 = vpop.f32.mrb[0].mxu0
        %v1392 = vpop.f32.mrb[0].mxu0
        %v1393 = vadd.f32 0.0, %v1392
        %v1394 = vpop.f32.mrb[0].mxu0
        %1395 = vdwg.mxu0
        %v1396 = vadd.f32 %v1275, %v1366
        %v1397 = vadd.f32 %v1276, %v1369
        %v1398 = vadd.f32 %v1277, %v1374
        %v1399 = vadd.f32 %v1278, %v1377
        %v1400 = vadd.f32 %v1279, %v1382
        %v1401 = vadd.f32 %v1280, %v1385
        %v1402 = vadd.f32 %v1281, %v1390
        %v1403 = vadd.f32 %v1282, %v1393
        %v1404 = vld [vmem:[%s1164] sm:$0xf]
        %v1405 = vld [vmem:[%s1164 + $0x4] sm:$0x1]
        %v1406 = vld [vmem:[%s1164 + $0x8] sm:$0xf]
        %v1407 = vld [vmem:[%s1164 + $0xc] sm:$0x1]
        %v1408 = vld [vmem:[%s1164 + $0x10] sm:$0xf]
        %v1409 = vld [vmem:[%s1164 + $0x14] sm:$0x1]
        %v1410 = vld [vmem:[%s1164 + $0x18] sm:$0xf]
        %v1411 = vld [vmem:[%s1164 + $0x1c] sm:$0x1]
        %v1412 = vld [vmem:[%s1164 + $0x20] sm:$0xf]
        %v1413 = vld [vmem:[%s1164 + $0x24] sm:$0x1]
        %v1414 = vld [vmem:[%s1164 + $0x28] sm:$0xf]
        %v1415 = vld [vmem:[%s1164 + $0x2c] sm:$0x1]
        %v1416 = vld [vmem:[%s1164 + $0x30] sm:$0xf]
        %v1417 = vld [vmem:[%s1164 + $0x34] sm:$0x1]
        %v1418 = vld [vmem:[%s1164 + $0x38] sm:$0xf]
        %v1419 = vld [vmem:[%s1164 + $0x3c] sm:$0x1]
        %v1421 = vshrl.u32 %v1404, 16
        %v1423 = vrot.slane %v1421, 4
        %v1424 = vshll.u32 %v1404, 16
        %v1426 = vrot.slane %v1424, 5
        %v1427 = vor.u32 %v1423, %v1426
        %v1428 = vrot.slane %v1427, 4
        %v1430 = vshll.u32 %v1405, 16
        %v1432 = vrot.slane %v1430, 5
        %v1433 = vsel %vm474, %v1428, %v1432
        %v1435 = vshrl.u32 %v1406, 16
        %v1437 = vrot.slane %v1435, 4
        %v1438 = vshll.u32 %v1406, 16
        %v1440 = vrot.slane %v1438, 5
        %v1441 = vor.u32 %v1437, %v1440
        %v1442 = vrot.slane %v1441, 4
        %v1444 = vshll.u32 %v1407, 16
        %v1446 = vrot.slane %v1444, 5
        %v1447 = vsel %vm474, %v1442, %v1446
        %v1449 = vshrl.u32 %v1408, 16
        %v1451 = vrot.slane %v1449, 4
        %v1452 = vshll.u32 %v1408, 16
        %v1454 = vrot.slane %v1452, 5
        %v1455 = vor.u32 %v1451, %v1454
        %v1456 = vrot.slane %v1455, 4
        %v1458 = vshll.u32 %v1409, 16
        %v1460 = vrot.slane %v1458, 5
        %v1461 = vsel %vm474, %v1456, %v1460
        %v1463 = vshrl.u32 %v1410, 16
        %v1465 = vrot.slane %v1463, 4
        %v1466 = vshll.u32 %v1410, 16
        %v1468 = vrot.slane %v1466, 5
        %v1469 = vor.u32 %v1465, %v1468
        %v1470 = vrot.slane %v1469, 4
        %v1472 = vshll.u32 %v1411, 16
        %v1474 = vrot.slane %v1472, 5
        %v1475 = vsel %vm474, %v1470, %v1474
        %v1477 = vshrl.u32 %v1412, 16
        %v1479 = vrot.slane %v1477, 4
        %v1480 = vshll.u32 %v1412, 16
        %v1482 = vrot.slane %v1480, 5
        %v1483 = vor.u32 %v1479, %v1482
        %v1484 = vrot.slane %v1483, 4
        %v1486 = vshll.u32 %v1413, 16
        %v1488 = vrot.slane %v1486, 5
        %v1489 = vsel %vm474, %v1484, %v1488
        %v1491 = vshrl.u32 %v1414, 16
        %v1493 = vrot.slane %v1491, 4
        %v1494 = vshll.u32 %v1414, 16
        %v1496 = vrot.slane %v1494, 5
        %v1497 = vor.u32 %v1493, %v1496
        %v1498 = vrot.slane %v1497, 4
        %v1500 = vshll.u32 %v1415, 16
        %v1502 = vrot.slane %v1500, 5
        %v1503 = vsel %vm474, %v1498, %v1502
        %v1505 = vshrl.u32 %v1416, 16
        %v1507 = vrot.slane %v1505, 4
        %v1508 = vshll.u32 %v1416, 16
        %v1510 = vrot.slane %v1508, 5
        %v1511 = vor.u32 %v1507, %v1510
        %v1512 = vrot.slane %v1511, 4
        %v1514 = vshll.u32 %v1417, 16
        %v1516 = vrot.slane %v1514, 5
        %v1517 = vsel %vm474, %v1512, %v1516
        %v1519 = vshrl.u32 %v1418, 16
        %v1521 = vrot.slane %v1519, 4
        %v1522 = vshll.u32 %v1418, 16
        %v1524 = vrot.slane %v1522, 5
        %v1525 = vor.u32 %v1521, %v1524
        %v1526 = vrot.slane %v1525, 4
        %v1528 = vshll.u32 %v1419, 16
        %v1530 = vrot.slane %v1528, 5
        %v1531 = vsel %vm474, %v1526, %v1530
        %s1532 = scalar_lea.vmem %s1, 32
        %v1533 = vld [vmem:[%s1532] sm:$0xf]
        %v1534 = vunpack.c.l.b16 %v1433
        %v1535 = vunpack.c.l.b16 %v1447
        %v1536 = vunpack.c.l.b16 %v1461
        %v1537 = vunpack.c.l.b16 %v1475
        %v1538 = vunpack.c.l.b16 %v1489
        %v1539 = vunpack.c.l.b16 %v1503
        %v1540 = vunpack.c.l.b16 %v1517
        %v1541 = vunpack.c.l.b16 %v1531
        %v1542 = vpack.c.b16 %v1535, %v1534
        %v1543 = vpack.c.b16 %v1537, %v1536
        %v1544 = vpack.c.b16 %v1539, %v1538
        %v1545 = vpack.c.b16 %v1541, %v1540
        %v1547 = vsel %vm274, %v1542, 0
        %v1550 = vsel %vm274, %v1543, 0
        %v1553 = vsel %vm274, %v1544, 0
        %v1556 = vsel %vm274, %v1545, 0
        %v1559 = vsel %vm287, %v1533, 0
        %1561 = vmatprep.subr.bf16.mxu0 0
        %1562 = vmatpush1.bf16.msra.mxu0 %v1559
        %1563 = vmatprep.subr.bf16.mxu0 0
        %1564 = vmatpush1.bf16.msra.mxu0 0
        %1565 = vmatprep.subr.bf16.mxu0 0
        %1566 = vmatpush1.bf16.msra.mxu0 0
        %1567 = vmatprep.subr.bf16.mxu0 0
        %1568 = vmatpush1.bf16.msra.mxu0 0
        %1569 = vmatprep.subr.bf16.mxu0 0
        %1570 = vmatpush1.bf16.msra.mxu0 0
        %1571 = vmatprep.subr.bf16.mxu0 0
        %1572 = vmatpush1.bf16.msra.mxu0 0
        %1573 = vmatprep.subr.bf16.mxu0 0
        %1574 = vmatpush1.bf16.msra.mxu0 0
        %1575 = vmatprep.subr.bf16.mxu0 0
        %1576 = vmatpush1.bf16.msra.mxu0 0
        %1577 = vmatprep.subr.bf16.mxu0 0
        %1578 = vmatpush1.bf16.msra.mxu0 0
        %1579 = vmatprep.subr.bf16.mxu0 0
        %1580 = vmatpush1.bf16.msra.mxu0 0
        %1581 = vmatprep.subr.bf16.mxu0 0
        %1582 = vmatpush1.bf16.msra.mxu0 0
        %1583 = vmatprep.subr.bf16.mxu0 0
        %1584 = vmatpush1.bf16.msra.mxu0 0
        %1585 = vmatprep.subr.bf16.mxu0 0
        %1586 = vmatpush1.bf16.msra.mxu0 0
        %1587 = vmatprep.subr.bf16.mxu0 0
        %1588 = vmatpush1.bf16.msra.mxu0 0
        %1589 = vmatprep.subr.bf16.mxu0 0
        %1590 = vmatpush1.bf16.msra.mxu0 0
        %1591 = vmatprep.subr.bf16.mxu0 0
        %1592 = vmatpush1.bf16.msra.mxu0 0
        %1593 = vmatprep.mubr.bf16.mxu0 0
        %1594 = vmatmul.mubr.bf16.gmra.mrb[0].mxu0 %v1547
        %v1595 = vpop.f32.mrb[0].mxu0
        %v1596 = vadd.f32 0.0, %v1595
        %v1597 = vpop.f32.mrb[0].mxu0
        %v1598 = vpop.f32.mrb[0].mxu0
        %v1599 = vadd.f32 0.0, %v1598
        %v1600 = vpop.f32.mrb[0].mxu0
        %1601 = vmatprep.mubr.bf16.mxu0 0
        %1602 = vmatmul.mubr.bf16.gmra.mrb[0].mxu0 %v1550
        %v1603 = vpop.f32.mrb[0].mxu0
        %v1604 = vadd.f32 0.0, %v1603
        %v1605 = vpop.f32.mrb[0].mxu0
        %v1606 = vpop.f32.mrb[0].mxu0
        %v1607 = vadd.f32 0.0, %v1606
        %v1608 = vpop.f32.mrb[0].mxu0
        %1609 = vmatprep.mubr.bf16.mxu0 0
        %1610 = vmatmul.mubr.bf16.gmra.mrb[0].mxu0 %v1553
        %v1611 = vpop.f32.mrb[0].mxu0
        %v1612 = vadd.f32 0.0, %v1611
        %v1613 = vpop.f32.mrb[0].mxu0
        %v1614 = vpop.f32.mrb[0].mxu0
        %v1615 = vadd.f32 0.0, %v1614
        %v1616 = vpop.f32.mrb[0].mxu0
        %1617 = vmatprep.mubr.bf16.mxu0 0
        %1618 = vmatmul.mubr.bf16.gmra.mrb[0].mxu0 %v1556
        %v1619 = vpop.f32.mrb[0].mxu0
        %v1620 = vadd.f32 0.0, %v1619
        %v1621 = vpop.f32.mrb[0].mxu0
        %v1622 = vpop.f32.mrb[0].mxu0
        %v1623 = vadd.f32 0.0, %v1622
        %v1624 = vpop.f32.mrb[0].mxu0
        %1625 = vdwg.mxu0
        %v1626 = vadd.f32 %v1396, %v1596
        %v1627 = vadd.f32 %v1397, %v1599
        %v1628 = vadd.f32 %v1398, %v1604
        %v1629 = vadd.f32 %v1399, %v1607
        %v1630 = vadd.f32 %v1400, %v1612
        %v1631 = vadd.f32 %v1401, %v1615
        %v1632 = vadd.f32 %v1402, %v1620
        %v1633 = vadd.f32 %v1403, %v1623
        %p1634 = scmp.eq.s32.totalorder %s27, 0
        // Predicated region
        $region29: #{tpu_custom_call.1} parent=27 // pred_check
          %p1635 = pneg %p1634
        $region30: #{tpu_custom_call.1} parent=27 // pred_check_branch
          %1637 = sbr.rel (%p1635) target = $region32
        $region31: #{tpu_custom_call.1} parent=27 // pred_region
          %1638 = vst [vmem:[%s214] sm:$0x1] 0.0
          %1639 = vst [vmem:[%s220] sm:$0x1] 0.0
        $region32: #{tpu_custom_call.1} parent=27 // pred_fallthru
          _
        %v1640 = vld [vmem:[%s214] sm:$0x1]
        %v1641 = vadd.f32 %v1626, %v1627
        %v1642 = vadd.f32 %v1641, %v1628
        %v1643 = vadd.f32 %v1642, %v1629
        %v1644 = vadd.f32 %v1643, %v1630
        %v1645 = vadd.f32 %v1644, %v1631
        %v1646 = vadd.f32 %v1645, %v1632
        %v1647 = vadd.f32 %v1646, %v1633
        %v1648 = vrot.slane %v1647, 4
        %v1649 = vadd.f32 %v1647, %v1648
        %v1650 = vrot.slane %v1649, 2
        %v1651 = vadd.f32 %v1649, %v1650
        %v1652 = vrot.slane %v1651, 1
        %v1653 = vadd.f32 %v1651, %v1652
        %v1654 = vadd.f32 %v1640, %v1653
        %1655 = vst [vmem:[%s214] sm:$0x1] %v1654
        %v1656 = vld [vmem:[%s220] sm:$0x1]
        %v1657 = vmul.f32 %v1626, %v1626
        %v1658 = vmul.f32 %v1627, %v1627
        %v1659 = vmul.f32 %v1628, %v1628
        %v1660 = vmul.f32 %v1629, %v1629
        %v1661 = vmul.f32 %v1630, %v1630
        %v1662 = vmul.f32 %v1631, %v1631
        %v1663 = vmul.f32 %v1632, %v1632
        %v1664 = vmul.f32 %v1633, %v1633
        %v1665 = vadd.f32 %v1657, %v1658
        %v1666 = vadd.f32 %v1665, %v1659
        %v1667 = vadd.f32 %v1666, %v1660
        %v1668 = vadd.f32 %v1667, %v1661
        %v1669 = vadd.f32 %v1668, %v1662
        %v1670 = vadd.f32 %v1669, %v1663
        %v1671 = vadd.f32 %v1670, %v1664
        %v1672 = vrot.slane %v1671, 4
        %v1673 = vadd.f32 %v1671, %v1672
        %v1674 = vrot.slane %v1673, 2
        %v1675 = vadd.f32 %v1673, %v1674
        %v1676 = vrot.slane %v1675, 1
        %v1677 = vadd.f32 %v1675, %v1676
        %v1678 = vadd.f32 %v1656, %v1677
        %1679 = vst [vmem:[%s220] sm:$0x1] %v1678
        %v1680 = vpack.c.bf16 %v1626, %v1626
        %v1681 = vpack.c.bf16 %v1627, %v1627
        %v1682 = vpack.c.bf16 %v1628, %v1628
        %v1683 = vpack.c.bf16 %v1629, %v1629
        %v1684 = vpack.c.bf16 %v1630, %v1630
        %v1685 = vpack.c.bf16 %v1631, %v1631
        %v1686 = vpack.c.bf16 %v1632, %v1632
        %v1687 = vpack.c.bf16 %v1633, %v1633
        %1688 = vst [vmem:[%s208] sm:$0xf] %v1680
        %1689 = vst [vmem:[%s208 + $0x4] sm:$0xf] %v1681
        %1690 = vst [vmem:[%s208 + $0x8] sm:$0xf] %v1682
        %1691 = vst [vmem:[%s208 + $0xc] sm:$0xf] %v1683
        %1692 = vst [vmem:[%s208 + $0x10] sm:$0xf] %v1684
        %1693 = vst [vmem:[%s208 + $0x14] sm:$0xf] %v1685
        %1694 = vst [vmem:[%s208 + $0x18] sm:$0xf] %v1686
        %1695 = vst [vmem:[%s208 + $0x1c] sm:$0xf] %v1687
        %s1696 = sand.u32 %s91, 1
        %s1697 = scalar_lea.sflag [#allocation3], %s1696
        %s1698 = sand.u32 %s91, 1
        %s1699 = smul.addr %s1698, 32
        %s1700 = scalar_lea.vmem [#allocation2], %s1699
        %s1701 = sand.u32 %s22, 1
        %s1702 = scalar_lea.sflag [#allocation5], %s1701
        %s1703 = sand.u32 %s117, 1
        %s1704 = scalar_lea.vmem [#allocation4], %s1703
        %s1705 = sand.u32 %s22, 1
        %s1706 = scalar_lea.sflag [#allocation5], %s1705
        %s1707 = sand.u32 %s143, 1
        %s1708 = scalar_lea.vmem [#allocation6], %s1707
        // Predicated region
        $region33: #{tpu_custom_call.1} parent=27 // pred_check
          %p1709 = pneg %p101
        $region34: #{tpu_custom_call.1} parent=27 // pred_check_branch
          %1711 = sbr.rel (%p1709) target = $region36
        $region35: #{tpu_custom_call.1} parent=27 // pred_region
          %s1712 = smul.u32 8, %s27
          %s1714 = ssub.s32 512, 512
          %1715 = vsyncadd %s1697, %s1714
          %s1716 = smul.addr %s26, 8
          %s1717 = sadd.s32 %s1712, %s1716
          %s1718 = smul.addr %s1717, 64
          %s1719 = scalar_lea.hbm %s2, %s1718
          %s1720 = sshll.u32 %s1700, 4
          %s1721 = int_to_ptr.vmem [resolvable:$true] %s1720
          %1726 = dma.vmem_to_hbm [thread:$0]  %s1721, 512, %s1719, %s1697, 64, 64, 4
        $region36: #{tpu_custom_call.1} parent=27 // pred_fallthru
          _
        // Predicated region
        $region37: #{tpu_custom_call.1} parent=27 // pred_check
          %p1727 = pneg %p127
        $region38: #{tpu_custom_call.1} parent=27 // pred_check_branch
          %1729 = sbr.rel (%p1727) target = $region40
        $region39: #{tpu_custom_call.1} parent=27 // pred_region
          %s1731 = ssub.s32 16, 16
          %1732 = vsyncadd %s1702, %s1731
          %s1733 = smul.addr %s26, 16
          %s1734 = scalar_lea.hbm %s3, %s1733
          %s1736 = sshll.u32 %s1704, 4
          %s1737 = int_to_ptr.vmem [resolvable:$true] %s1736
          %1739 = dma.vmem_to_hbm [thread:$0]  %s1737, 16, %s1734, %s1702
        $region40: #{tpu_custom_call.1} parent=27 // pred_fallthru
          _
        // Predicated region
        $region41: #{tpu_custom_call.1} parent=27 // pred_check
          %p1740 = pneg %p153
        $region42: #{tpu_custom_call.1} parent=27 // pred_check_branch
          %1742 = sbr.rel (%p1740) target = $region44
        $region43: #{tpu_custom_call.1} parent=27 // pred_region
          %s1744 = ssub.s32 16, 16
          %1745 = vsyncadd %s1706, %s1744
          %s1746 = smul.addr %s26, 16
          %s1747 = scalar_lea.hbm %s4, %s1746
          %s1749 = sshll.u32 %s1708, 4
          %s1750 = int_to_ptr.vmem [resolvable:$true] %s1749
          %1752 = dma.vmem_to_hbm [thread:$0]  %s1750, 16, %s1747, %s1706
        $region44: #{tpu_custom_call.1} parent=27 // pred_fallthru
          _
      $region28: #{tpu_custom_call.1} parent=5 // pred_fallthru
        _
      %p1753 = scmp.le.s32.totalorder 2, %s17
      // Predicated region
      $region45: #{tpu_custom_call.1} parent=5 // pred_check
        %p1754 = pneg %p1753
      $region46: #{tpu_custom_call.1} parent=5 // pred_check_branch
        %1756 = sbr.rel (%p1754) target = $region48
      $region47: #{tpu_custom_call.1} parent=5 // pred_region
        %s1757 = ssub.s32 %s17, 2
        // Predicated region
        $region49: #{tpu_custom_call.1} parent=47 // pred_check
          %p1758 = pneg %p107
        $region50: #{tpu_custom_call.1} parent=47 // pred_check_branch
          %1760 = sbr.rel (%p1758) target = $region52
        $region51: #{tpu_custom_call.1} parent=47 // pred_region
          %s1761 = sand.u32 %s92, 1
          %s1762 = scalar_lea.sflag [#allocation3], %s1761
          %s1763 = sand.u32 %s92, 1
          %s1764 = smul.addr %s1763, 32
          %s1765 = scalar_lea.vmem [#allocation2], %s1764
          %1766 = dma.done %s1762, 512
        $region52: #{tpu_custom_call.1} parent=47 // pred_fallthru
          _
        // Predicated region
        $region53: #{tpu_custom_call.1} parent=47 // pred_check
          %p1767 = pneg %p133
        $region54: #{tpu_custom_call.1} parent=47 // pred_check_branch
          %1769 = sbr.rel (%p1767) target = $region56
        $region55: #{tpu_custom_call.1} parent=47 // pred_region
          %s1770 = sand.u32 %s23, 1
          %s1771 = scalar_lea.sflag [#allocation5], %s1770
          %s1772 = sand.u32 %s118, 1
          %s1773 = scalar_lea.vmem [#allocation4], %s1772
          %1774 = dma.done %s1771, 16
        $region56: #{tpu_custom_call.1} parent=47 // pred_fallthru
          _
        // Predicated region
        $region57: #{tpu_custom_call.1} parent=47 // pred_check
          %p1775 = pneg %p159
        $region58: #{tpu_custom_call.1} parent=47 // pred_check_branch
          %1777 = sbr.rel (%p1775) target = $region60
        $region59: #{tpu_custom_call.1} parent=47 // pred_region
          %s1778 = sand.u32 %s23, 1
          %s1779 = scalar_lea.sflag [#allocation5], %s1778
          %s1780 = sand.u32 %s144, 1
          %s1781 = scalar_lea.vmem [#allocation6], %s1780
          %1782 = dma.done %s1779, 16
        $region60: #{tpu_custom_call.1} parent=47 // pred_fallthru
          _
      $region48: #{tpu_custom_call.1} parent=5 // pred_fallthru
        _
    $region6: #{tpu_custom_call.1} parent=1 // loop_footer
      %s21 = sadd.s32 1, %s17
    $region7: #{tpu_custom_call.1} parent=1 // loop_footer_branch
      %16 = sbr.rel target = $region3
    $region8: #{tpu_custom_call.1} parent=1 // loop_exit
      _
    %1783 = vsyncpa [#allocation3], 1
    %s1784 = scalar_lea.sflag [#allocation3], 1
    %1785 = vsyncpa %s1784, 1
    %1786 = vsyncpa [#allocation5], 1
    %s1787 = scalar_lea.sflag [#allocation5], 1
    %1788 = vsyncpa %s1787, 1

</llo_original>
